<compile_context>
chip_gen: v5e
topology: v5e:2x2
jax: 0.10.0
libtpu: 0.0.40
codegen_flags: <defaults>
</compile_context>

<pallas_src>
import functools

import jax
import jax.numpy as jnp
import numpy as np
from jax import lax
from jax.experimental import pallas as pl
from jax.experimental.pallas import tpu as pltpu

MAX_DEC_LENGTH = 100
MAX_TYPE_NUM = 5
LN_EPS = 1e-12


def _layer_norm(x, gamma, beta, eps):
    mean = jnp.mean(x, axis=-1, keepdims=True)
    var = jnp.mean(jnp.square(x - mean), axis=-1, keepdims=True)
    return (x - mean) * lax.rsqrt(var + eps) * gamma + beta


def _pick_batch_tile(B, S, max_tile=8):
    """Largest TB <= max_tile that divides B, keeps (TB*S) sublane-aligned, and
    (when B > 1) leaves at least 2 grid steps for megacore/v7x."""
    cap = min(max_tile, B // 2) if B > 1 else 1
    for cand in range(max(cap, 1), 0, -1):
        if B % cand == 0 and (cand * S) % 8 == 0:
            return cand
    return B  # whole batch in one step: block == full array, always legal


def _prev_pred_emb_kernel(
    inds_ref,   # (B*S,)       int32, SMEM (scalar prefetch)
    ans_ref,    # (A, H)       table dtype, resident whole-VMEM answer table
    emb2_ref,   # (2, TB*S, H) f32, resident hoisted LN(pos + type), tiled over TB
    ln_ref,     # (4, H)       f32, resident [g_ans, b_ans, g_ocr, b_ocr]
    ocr_ref,    # (TB, O, H)   table dtype, this tile's OCR rows
    mask_ref,   # (TB*S, 1)    f32, 1.0 where prev_ind selects an OCR row
    out_ref,    # (TB*S, H)    output block
    raw_ref,    # (TB*S, H)    VMEM scratch for the gathered rows
    *,
    ans_num,
    eps,
):
    A = ans_num
    TB, O, _ = ocr_ref.shape
    S = out_ref.shape[0] // TB
    base = pl.program_id(0) * (TB * S)

    # --- Gather: one dynamic row-slice from the shared answer table and one
    #     from this sample's OCR slab per decoder step; a scalar predicate
    #     picks the source.  Rows go straight into VMEM scratch so only ~one
    #     row is live at a time (no sublane concat chains, no vreg blowup).
    for i in range(TB):
        for s in range(S):
            r = i * S + s
            idx = inds_ref[base + r]                                  # scalar from SMEM
            # Clamp so the unused branch still reads in-bounds (result discarded).
            # Note: indices >= A+O clamp to the last OCR row (torch F.embedding
            # would raise); callers guarantee in-range prev_inds.
            a_row = ans_ref[pl.ds(jnp.clip(idx, 0, A - 1), 1), :]          # (1, H)
            o_row = ocr_ref[i, pl.ds(jnp.clip(idx - A, 0, O - 1), 1), :]   # (1, H)
            raw_ref[pl.ds(r, 1), :] = jnp.where(idx >= A, o_row, a_row)

    # --- Full-tile math on the (TB*S, H) block: single LayerNorm pass, two
    #     full-width affine variants, per-row selects via a (TB*S, 1) mask.
    raw = raw_ref[...].astype(jnp.float32)
    mean = jnp.mean(raw, axis=-1, keepdims=True)
    var = jnp.mean(jnp.square(raw - mean), axis=-1, keepdims=True)
    norm = (raw - mean) * lax.rsqrt(var + eps)

    ln = ln_ref[...]
    ans_branch = norm * ln[0:1, :] + ln[1:2, :]
    ocr_branch = norm * ln[2:3, :] + ln[3:4, :]
    is_ocr = mask_ref[...] > 0.5                              # (TB*S, 1), broadcasts over H
    raw_ln = jnp.where(is_ocr, ocr_branch, ans_branch)
    emb = jnp.where(is_ocr, emb2_ref[1], emb2_ref[0])         # hoisted LN(pos + type)

    out_ref[...] = (raw_ln + emb).astype(out_ref.dtype)       # single lane-dense store


def prev_pred_embeddings(ans_emb, ocr_emb, prev_inds, params, eps=LN_EPS,
                         max_batch_tile=8):
    """JAX/Pallas equivalent of PrevPredEmbeddings.forward (eval mode)."""
    B, S = prev_inds.shape
    A, H = ans_emb.shape
    O = ocr_emb.shape[1]
    f32 = jnp.float32

    # Keep the big tables in their input dtype (e.g. bf16 stays bf16: halves the
    # resident answer-table footprint and the per-tile OCR HBM->VMEM traffic).
    tab_dtype = jnp.promote_types(ans_emb.dtype, ocr_emb.dtype)
    ans_emb = ans_emb.astype(tab_dtype)
    ocr_emb = ocr_emb.astype(tab_dtype)

    TB = _pick_batch_tile(B, S, max_batch_tile)
    grid_b = B // TB

    # Hoisted batch-invariant LayerNorm(position + token_type) for both reachable
    # token types (0 = answer, 1 = OCR), tiled over the TB samples of one block.
    pos = params["pos_table"][:S].astype(f32)                                   # (S, H)
    tt = params["type_table"][:2].astype(f32)                                   # (2, H)
    emb2 = _layer_norm(pos[None, :, :] + tt[:, None, :],
                       params["g_emb"].astype(f32), params["b_emb"].astype(f32),
                       eps)                                                     # (2, S, H)
    emb2 = jnp.tile(emb2, (1, TB, 1))                                           # (2, TB*S, H)

    ln4 = jnp.stack([params["g_ans"], params["b_ans"],
                     params["g_ocr"], params["b_ocr"]], axis=0).astype(f32)     # (4, H)

    inds_flat = prev_inds.reshape(B * S).astype(jnp.int32)       # 1-D SMEM (cheap padding)
    ocr_mask = (prev_inds.reshape(B * S, 1) >= A).astype(f32)    # (B*S, 1)

    kernel = functools.partial(_prev_pred_emb_kernel, ans_num=A, eps=eps)

    # Single VMEM copy, no per-step DMA / double-buffering for batch-invariant operands.
    resident = pl.BlockSpec(memory_space=pltpu.MemorySpace.VMEM)

    grid_spec = pltpu.PrefetchScalarGridSpec(
        num_scalar_prefetch=1,                   # prev_inds -> SMEM
        grid=(grid_b,),
        in_specs=[
            resident,                                               # answer table (A, H)
            resident,                                               # emb2 (2, TB*S, H)
            resident,                                               # fused LN params (4, H)
            pl.BlockSpec((TB, O, H), lambda t, inds: (t, 0, 0)),    # this tile's OCR rows
            pl.BlockSpec((TB * S, 1), lambda t, inds: (t, 0)),      # OCR-type mask
        ],
        out_specs=pl.BlockSpec((TB * S, H), lambda t, inds: (t, 0)),
        scratch_shapes=[pltpu.VMEM((TB * S, H), tab_dtype)],        # gather scratch
    )

    # VMEM budget: single-copy residents + double-buffered OCR/out/mask tiles
    # + gather scratch + headroom, clamped <= 48 MiB (v7x has 64 MiB per TC).
    itab = jnp.dtype(tab_dtype).itemsize
    est = (A * H * itab                      # resident answer table (1 copy)
           + emb2.size * 4 + ln4.size * 4    # resident small tables (1 copy)
           + 2 * TB * O * H * itab           # OCR tile, double-buffered
           + 2 * TB * S * H * itab           # output tile, double-buffered
           + 2 * TB * S * 4                  # mask tile, double-buffered
           + TB * S * H * itab               # gather scratch
           + (4 << 20))                      # headroom
    try:
        vmem_cap = int(pltpu.get_tpu_info().vmem_capacity_bytes)
    except Exception:
        vmem_cap = 64 << 20
    vmem_ceiling = min(48 << 20, (vmem_cap * 3) // 4)
    vmem_limit = int(min(vmem_ceiling, max(8 << 20, est)))

    out = pl.pallas_call(
        kernel,
        out_shape=jax.ShapeDtypeStruct((B * S, H), tab_dtype),
        grid_spec=grid_spec,
        compiler_params=pltpu.CompilerParams(
            dimension_semantics=("parallel",),
            vmem_limit_bytes=vmem_limit,
        ),
    )(inds_flat, ans_emb, emb2, ln4, ocr_emb, ocr_mask)

    return out.reshape(B, S, H)


def _reference(ans_emb, ocr_emb, prev_inds, params, eps=LN_EPS):
    """Pure-JAX reference mirroring the PyTorch forward (eval mode)."""
    B, S = prev_inds.shape
    A, H = ans_emb.shape

    def ln(x, g, b):
        m = jnp.mean(x, axis=-1, keepdims=True)
        v = jnp.mean((x - m) ** 2, axis=-1, keepdims=True)
        return (x - m) / jnp.sqrt(v + eps) * g + b

    ans_ln = ln(ans_emb.astype(jnp.float32), params["g_ans"], params["b_ans"])
    ocr_ln = ln(ocr_emb.astype(jnp.float32), params["g_ocr"], params["b_ocr"])
    cat = jnp.concatenate(
        [jnp.broadcast_to(ans_ln[None], (B, A, H)), ocr_ln], axis=1
    )
    raw = jnp.take_along_axis(cat, prev_inds[:, :, None], axis=1)
    pos = params["pos_table"][:S][None, :, :]
    tt_ids = (prev_inds >= A).astype(jnp.int32)
    type_emb = params["type_table"][tt_ids]
    emb = ln(pos + type_emb, params["g_emb"], params["b_emb"])
    return raw + emb


if __name__ == "__main__":
    # Small shapes consistent with the module (B=4 exercises TB=2 with 2 grid steps).
    B, S, A, O, H = 4, 8, 16, 24, 128

    key = jax.random.PRNGKey(0)
    k = jax.random.split(key, 11)

    # Deterministic params: nn.Embedding ~ N(0,1); LayerNorm gamma/beta perturbed
    # so the per-row ans/ocr/emb affine selection is actually exercised.
    params = {
        "pos_table": jax.random.normal(k[0], (MAX_DEC_LENGTH, H), jnp.float32),
        "type_table": jax.random.normal(k[1], (MAX_TYPE_NUM, H), jnp.float32),
        "g_ans": 1.0 + 0.1 * jax.random.normal(k[2], (H,), jnp.float32),
        "b_ans": 0.1 * jax.random.normal(k[3], (H,), jnp.float32),
        "g_ocr": 1.0 + 0.1 * jax.random.normal(k[4], (H,), jnp.float32),
        "b_ocr": 0.1 * jax.random.normal(k[5], (H,), jnp.float32),
        "g_emb": 1.0 + 0.1 * jax.random.normal(k[6], (H,), jnp.float32),
        "b_emb": 0.1 * jax.random.normal(k[7], (H,), jnp.float32),
    }

    ans_emb = jax.random.normal(k[8], (A, H), jnp.float32)
    ocr_emb = jax.random.normal(k[9], (B, O, H), jnp.float32)
    prev_inds = jax.random.randint(k[10], (B, S), 0, A + O, jnp.int32)

    out = prev_pred_embeddings(ans_emb, ocr_emb, prev_inds, params)
    out = jax.block_until_ready(out)

    ref = _reference(ans_emb, ocr_emb, prev_inds, params)
    np.testing.assert_allclose(np.asarray(out), np.asarray(ref), rtol=1e-5, atol=1e-5)

    print("KERNEL_OK")
</pallas_src>

<mosaic_0001>
module attributes {stable_mosaic.version = 11 : i64} {
  func.func @_prev_pred_emb_kernel(%arg0: i32, %arg1: memref<32xi32, #tpu.memory_space<smem>>, %arg2: memref<16x128xf32, #tpu.memory_space<vmem>>, %arg3: memref<2x16x128xf32, #tpu.memory_space<vmem>>, %arg4: memref<4x128xf32, #tpu.memory_space<vmem>>, %arg5: memref<2x24x128xf32, #tpu.memory_space<vmem>>, %arg6: memref<16x1xf32, #tpu.memory_space<vmem>>, %arg7: memref<16x128xf32, #tpu.memory_space<vmem>>, %arg8: memref<16x128xf32, #tpu.memory_space<vmem>>) attributes {dimension_semantics = [#tpu.dimension_semantics<parallel>], iteration_bounds = array<i64: 2>, scalar_prefetch = 1 : i64, scratch_operands = 1 : i64, tpu.core_type = #tpu.core_type<tc>, window_params = [{pipeline_mode = #tpu.pipeline_mode<synchronous>, transform_indices = @transform_0, window_bounds = array<i64: 16, 128>}, {pipeline_mode = #tpu.pipeline_mode<synchronous>, transform_indices = @transform_1, window_bounds = array<i64: 2, 16, 128>}, {pipeline_mode = #tpu.pipeline_mode<synchronous>, transform_indices = @transform_2, window_bounds = array<i64: 4, 128>}, {transform_indices = @transform_3, window_bounds = array<i64: 2, 24, 128>}, {transform_indices = @transform_4, window_bounds = array<i64: 16, 1>}, {transform_indices = @transform_5, window_bounds = array<i64: 16, 128>}]} {
    %c16_i32 = arith.constant 16 : i32
    %0 = arith.muli %arg0, %c16_i32 : i32
    %c0_i32 = arith.constant 0 : i32
    %1 = arith.addi %0, %c0_i32 : i32
    %2 = arith.index_cast %1 : i32 to index
    %3 = memref.load %arg1[%2] : memref<32xi32, #tpu.memory_space<smem>>
    %c0_i32_0 = arith.constant 0 : i32
    %c15_i32 = arith.constant 15 : i32
    %4 = arith.maxsi %c0_i32_0, %3 : i32
    %5 = arith.minsi %c15_i32, %4 : i32
    %6 = arith.index_cast %5 : i32 to index
    %c0 = arith.constant 0 : index
    %7 = vector.load %arg2[%6, %c0] : memref<16x128xf32, #tpu.memory_space<vmem>>, vector<1x128xf32>
    %c16_i32_1 = arith.constant 16 : i32
    %8 = arith.subi %3, %c16_i32_1 : i32
    %c0_i32_2 = arith.constant 0 : i32
    %c23_i32 = arith.constant 23 : i32
    %9 = arith.maxsi %c0_i32_2, %8 : i32
    %10 = arith.minsi %c23_i32, %9 : i32
    %c0_3 = arith.constant 0 : index
    %11 = arith.index_cast %10 : i32 to index
    %c0_4 = arith.constant 0 : index
    %12 = vector.load %arg5[%c0_3, %11, %c0_4] : memref<2x24x128xf32, #tpu.memory_space<vmem>>, vector<1x1x128xf32>
    %13 = vector.shape_cast %12 : vector<1x1x128xf32> to vector<1x128xf32>
    %c16_i32_5 = arith.constant 16 : i32
    %14 = arith.cmpi sge, %3, %c16_i32_5 : i32
    %15 = arith.select %14, %13, %7 : vector<1x128xf32>
    %c0_6 = arith.constant 0 : index
    %c0_7 = arith.constant 0 : index
    %16 = vector.load %arg8[%c0_6, %c0_7] : memref<16x128xf32, #tpu.memory_space<vmem>>, vector<1x128xf32>
    tpu.vector_store %arg8[%c0_6, %c0_7], %15 {strides = array<i32>} : memref<16x128xf32, #tpu.memory_space<vmem>>, vector<1x128xf32>,
    %c1_i32 = arith.constant 1 : i32
    %17 = arith.addi %0, %c1_i32 : i32
    %18 = arith.index_cast %17 : i32 to index
    %19 = memref.load %arg1[%18] : memref<32xi32, #tpu.memory_space<smem>>
    %c0_i32_8 = arith.constant 0 : i32
    %c15_i32_9 = arith.constant 15 : i32
    %20 = arith.maxsi %c0_i32_8, %19 : i32
    %21 = arith.minsi %c15_i32_9, %20 : i32
    %22 = arith.index_cast %21 : i32 to index
    %c0_10 = arith.constant 0 : index
    %23 = vector.load %arg2[%22, %c0_10] : memref<16x128xf32, #tpu.memory_space<vmem>>, vector<1x128xf32>
    %c16_i32_11 = arith.constant 16 : i32
    %24 = arith.subi %19, %c16_i32_11 : i32
    %c0_i32_12 = arith.constant 0 : i32
    %c23_i32_13 = arith.constant 23 : i32
    %25 = arith.maxsi %c0_i32_12, %24 : i32
    %26 = arith.minsi %c23_i32_13, %25 : i32
    %c0_14 = arith.constant 0 : index
    %27 = arith.index_cast %26 : i32 to index
    %c0_15 = arith.constant 0 : index
    %28 = vector.load %arg5[%c0_14, %27, %c0_15] : memref<2x24x128xf32, #tpu.memory_space<vmem>>, vector<1x1x128xf32>
    %29 = vector.shape_cast %28 : vector<1x1x128xf32> to vector<1x128xf32>
    %c16_i32_16 = arith.constant 16 : i32
    %30 = arith.cmpi sge, %19, %c16_i32_16 : i32
    %31 = arith.select %30, %29, %23 : vector<1x128xf32>
    %c1 = arith.constant 1 : index
    %c0_17 = arith.constant 0 : index
    %32 = vector.load %arg8[%c1, %c0_17] : memref<16x128xf32, #tpu.memory_space<vmem>>, vector<1x128xf32>
    tpu.vector_store %arg8[%c1, %c0_17], %31 {strides = array<i32>} : memref<16x128xf32, #tpu.memory_space<vmem>>, vector<1x128xf32>,
    %c2_i32 = arith.constant 2 : i32
    %33 = arith.addi %0, %c2_i32 : i32
    %34 = arith.index_cast %33 : i32 to index
    %35 = memref.load %arg1[%34] : memref<32xi32, #tpu.memory_space<smem>>
    %c0_i32_18 = arith.constant 0 : i32
    %c15_i32_19 = arith.constant 15 : i32
    %36 = arith.maxsi %c0_i32_18, %35 : i32
    %37 = arith.minsi %c15_i32_19, %36 : i32
    %38 = arith.index_cast %37 : i32 to index
    %c0_20 = arith.constant 0 : index
    %39 = vector.load %arg2[%38, %c0_20] : memref<16x128xf32, #tpu.memory_space<vmem>>, vector<1x128xf32>
    %c16_i32_21 = arith.constant 16 : i32
    %40 = arith.subi %35, %c16_i32_21 : i32
    %c0_i32_22 = arith.constant 0 : i32
    %c23_i32_23 = arith.constant 23 : i32
    %41 = arith.maxsi %c0_i32_22, %40 : i32
    %42 = arith.minsi %c23_i32_23, %41 : i32
    %c0_24 = arith.constant 0 : index
    %43 = arith.index_cast %42 : i32 to index
    %c0_25 = arith.constant 0 : index
    %44 = vector.load %arg5[%c0_24, %43, %c0_25] : memref<2x24x128xf32, #tpu.memory_space<vmem>>, vector<1x1x128xf32>
    %45 = vector.shape_cast %44 : vector<1x1x128xf32> to vector<1x128xf32>
    %c16_i32_26 = arith.constant 16 : i32
    %46 = arith.cmpi sge, %35, %c16_i32_26 : i32
    %47 = arith.select %46, %45, %39 : vector<1x128xf32>
    %c2 = arith.constant 2 : index
    %c0_27 = arith.constant 0 : index
    %48 = vector.load %arg8[%c2, %c0_27] : memref<16x128xf32, #tpu.memory_space<vmem>>, vector<1x128xf32>
    tpu.vector_store %arg8[%c2, %c0_27], %47 {strides = array<i32>} : memref<16x128xf32, #tpu.memory_space<vmem>>, vector<1x128xf32>,
    %c3_i32 = arith.constant 3 : i32
    %49 = arith.addi %0, %c3_i32 : i32
    %50 = arith.index_cast %49 : i32 to index
    %51 = memref.load %arg1[%50] : memref<32xi32, #tpu.memory_space<smem>>
    %c0_i32_28 = arith.constant 0 : i32
    %c15_i32_29 = arith.constant 15 : i32
    %52 = arith.maxsi %c0_i32_28, %51 : i32
    %53 = arith.minsi %c15_i32_29, %52 : i32
    %54 = arith.index_cast %53 : i32 to index
    %c0_30 = arith.constant 0 : index
    %55 = vector.load %arg2[%54, %c0_30] : memref<16x128xf32, #tpu.memory_space<vmem>>, vector<1x128xf32>
    %c16_i32_31 = arith.constant 16 : i32
    %56 = arith.subi %51, %c16_i32_31 : i32
    %c0_i32_32 = arith.constant 0 : i32
    %c23_i32_33 = arith.constant 23 : i32
    %57 = arith.maxsi %c0_i32_32, %56 : i32
    %58 = arith.minsi %c23_i32_33, %57 : i32
    %c0_34 = arith.constant 0 : index
    %59 = arith.index_cast %58 : i32 to index
    %c0_35 = arith.constant 0 : index
    %60 = vector.load %arg5[%c0_34, %59, %c0_35] : memref<2x24x128xf32, #tpu.memory_space<vmem>>, vector<1x1x128xf32>
    %61 = vector.shape_cast %60 : vector<1x1x128xf32> to vector<1x128xf32>
    %c16_i32_36 = arith.constant 16 : i32
    %62 = arith.cmpi sge, %51, %c16_i32_36 : i32
    %63 = arith.select %62, %61, %55 : vector<1x128xf32>
    %c3 = arith.constant 3 : index
    %c0_37 = arith.constant 0 : index
    %64 = vector.load %arg8[%c3, %c0_37] : memref<16x128xf32, #tpu.memory_space<vmem>>, vector<1x128xf32>
    tpu.vector_store %arg8[%c3, %c0_37], %63 {strides = array<i32>} : memref<16x128xf32, #tpu.memory_space<vmem>>, vector<1x128xf32>,
    %c4_i32 = arith.constant 4 : i32
    %65 = arith.addi %0, %c4_i32 : i32
    %66 = arith.index_cast %65 : i32 to index
    %67 = memref.load %arg1[%66] : memref<32xi32, #tpu.memory_space<smem>>
    %c0_i32_38 = arith.constant 0 : i32
    %c15_i32_39 = arith.constant 15 : i32
    %68 = arith.maxsi %c0_i32_38, %67 : i32
    %69 = arith.minsi %c15_i32_39, %68 : i32
    %70 = arith.index_cast %69 : i32 to index
    %c0_40 = arith.constant 0 : index
    %71 = vector.load %arg2[%70, %c0_40] : memref<16x128xf32, #tpu.memory_space<vmem>>, vector<1x128xf32>
    %c16_i32_41 = arith.constant 16 : i32
    %72 = arith.subi %67, %c16_i32_41 : i32
    %c0_i32_42 = arith.constant 0 : i32
    %c23_i32_43 = arith.constant 23 : i32
    %73 = arith.maxsi %c0_i32_42, %72 : i32
    %74 = arith.minsi %c23_i32_43, %73 : i32
    %c0_44 = arith.constant 0 : index
    %75 = arith.index_cast %74 : i32 to index
    %c0_45 = arith.constant 0 : index
    %76 = vector.load %arg5[%c0_44, %75, %c0_45] : memref<2x24x128xf32, #tpu.memory_space<vmem>>, vector<1x1x128xf32>
    %77 = vector.shape_cast %76 : vector<1x1x128xf32> to vector<1x128xf32>
    %c16_i32_46 = arith.constant 16 : i32
    %78 = arith.cmpi sge, %67, %c16_i32_46 : i32
    %79 = arith.select %78, %77, %71 : vector<1x128xf32>
    %c4 = arith.constant 4 : index
    %c0_47 = arith.constant 0 : index
    %80 = vector.load %arg8[%c4, %c0_47] : memref<16x128xf32, #tpu.memory_space<vmem>>, vector<1x128xf32>
    tpu.vector_store %arg8[%c4, %c0_47], %79 {strides = array<i32>} : memref<16x128xf32, #tpu.memory_space<vmem>>, vector<1x128xf32>,
    %c5_i32 = arith.constant 5 : i32
    %81 = arith.addi %0, %c5_i32 : i32
    %82 = arith.index_cast %81 : i32 to index
    %83 = memref.load %arg1[%82] : memref<32xi32, #tpu.memory_space<smem>>
    %c0_i32_48 = arith.constant 0 : i32
    %c15_i32_49 = arith.constant 15 : i32
    %84 = arith.maxsi %c0_i32_48, %83 : i32
    %85 = arith.minsi %c15_i32_49, %84 : i32
    %86 = arith.index_cast %85 : i32 to index
    %c0_50 = arith.constant 0 : index
    %87 = vector.load %arg2[%86, %c0_50] : memref<16x128xf32, #tpu.memory_space<vmem>>, vector<1x128xf32>
    %c16_i32_51 = arith.constant 16 : i32
    %88 = arith.subi %83, %c16_i32_51 : i32
    %c0_i32_52 = arith.constant 0 : i32
    %c23_i32_53 = arith.constant 23 : i32
    %89 = arith.maxsi %c0_i32_52, %88 : i32
    %90 = arith.minsi %c23_i32_53, %89 : i32
    %c0_54 = arith.constant 0 : index
    %91 = arith.index_cast %90 : i32 to index
    %c0_55 = arith.constant 0 : index
    %92 = vector.load %arg5[%c0_54, %91, %c0_55] : memref<2x24x128xf32, #tpu.memory_space<vmem>>, vector<1x1x128xf32>
    %93 = vector.shape_cast %92 : vector<1x1x128xf32> to vector<1x128xf32>
    %c16_i32_56 = arith.constant 16 : i32
    %94 = arith.cmpi sge, %83, %c16_i32_56 : i32
    %95 = arith.select %94, %93, %87 : vector<1x128xf32>
    %c5 = arith.constant 5 : index
    %c0_57 = arith.constant 0 : index
    %96 = vector.load %arg8[%c5, %c0_57] : memref<16x128xf32, #tpu.memory_space<vmem>>, vector<1x128xf32>
    tpu.vector_store %arg8[%c5, %c0_57], %95 {strides = array<i32>} : memref<16x128xf32, #tpu.memory_space<vmem>>, vector<1x128xf32>,
    %c6_i32 = arith.constant 6 : i32
    %97 = arith.addi %0, %c6_i32 : i32
    %98 = arith.index_cast %97 : i32 to index
    %99 = memref.load %arg1[%98] : memref<32xi32, #tpu.memory_space<smem>>
    %c0_i32_58 = arith.constant 0 : i32
    %c15_i32_59 = arith.constant 15 : i32
    %100 = arith.maxsi %c0_i32_58, %99 : i32
    %101 = arith.minsi %c15_i32_59, %100 : i32
    %102 = arith.index_cast %101 : i32 to index
    %c0_60 = arith.constant 0 : index
    %103 = vector.load %arg2[%102, %c0_60] : memref<16x128xf32, #tpu.memory_space<vmem>>, vector<1x128xf32>
    %c16_i32_61 = arith.constant 16 : i32
    %104 = arith.subi %99, %c16_i32_61 : i32
    %c0_i32_62 = arith.constant 0 : i32
    %c23_i32_63 = arith.constant 23 : i32
    %105 = arith.maxsi %c0_i32_62, %104 : i32
    %106 = arith.minsi %c23_i32_63, %105 : i32
    %c0_64 = arith.constant 0 : index
    %107 = arith.index_cast %106 : i32 to index
    %c0_65 = arith.constant 0 : index
    %108 = vector.load %arg5[%c0_64, %107, %c0_65] : memref<2x24x128xf32, #tpu.memory_space<vmem>>, vector<1x1x128xf32>
    %109 = vector.shape_cast %108 : vector<1x1x128xf32> to vector<1x128xf32>
    %c16_i32_66 = arith.constant 16 : i32
    %110 = arith.cmpi sge, %99, %c16_i32_66 : i32
    %111 = arith.select %110, %109, %103 : vector<1x128xf32>
    %c6 = arith.constant 6 : index
    %c0_67 = arith.constant 0 : index
    %112 = vector.load %arg8[%c6, %c0_67] : memref<16x128xf32, #tpu.memory_space<vmem>>, vector<1x128xf32>
    tpu.vector_store %arg8[%c6, %c0_67], %111 {strides = array<i32>} : memref<16x128xf32, #tpu.memory_space<vmem>>, vector<1x128xf32>,
    %c7_i32 = arith.constant 7 : i32
    %113 = arith.addi %0, %c7_i32 : i32
    %114 = arith.index_cast %113 : i32 to index
    %115 = memref.load %arg1[%114] : memref<32xi32, #tpu.memory_space<smem>>
    %c0_i32_68 = arith.constant 0 : i32
    %c15_i32_69 = arith.constant 15 : i32
    %116 = arith.maxsi %c0_i32_68, %115 : i32
    %117 = arith.minsi %c15_i32_69, %116 : i32
    %118 = arith.index_cast %117 : i32 to index
    %c0_70 = arith.constant 0 : index
    %119 = vector.load %arg2[%118, %c0_70] : memref<16x128xf32, #tpu.memory_space<vmem>>, vector<1x128xf32>
    %c16_i32_71 = arith.constant 16 : i32
    %120 = arith.subi %115, %c16_i32_71 : i32
    %c0_i32_72 = arith.constant 0 : i32
    %c23_i32_73 = arith.constant 23 : i32
    %121 = arith.maxsi %c0_i32_72, %120 : i32
    %122 = arith.minsi %c23_i32_73, %121 : i32
    %c0_74 = arith.constant 0 : index
    %123 = arith.index_cast %122 : i32 to index
    %c0_75 = arith.constant 0 : index
    %124 = vector.load %arg5[%c0_74, %123, %c0_75] : memref<2x24x128xf32, #tpu.memory_space<vmem>>, vector<1x1x128xf32>
    %125 = vector.shape_cast %124 : vector<1x1x128xf32> to vector<1x128xf32>
    %c16_i32_76 = arith.constant 16 : i32
    %126 = arith.cmpi sge, %115, %c16_i32_76 : i32
    %127 = arith.select %126, %125, %119 : vector<1x128xf32>
    %c7 = arith.constant 7 : index
    %c0_77 = arith.constant 0 : index
    %128 = vector.load %arg8[%c7, %c0_77] : memref<16x128xf32, #tpu.memory_space<vmem>>, vector<1x128xf32>
    tpu.vector_store %arg8[%c7, %c0_77], %127 {strides = array<i32>} : memref<16x128xf32, #tpu.memory_space<vmem>>, vector<1x128xf32>,
    %c8_i32 = arith.constant 8 : i32
    %129 = arith.addi %0, %c8_i32 : i32
    %130 = arith.index_cast %129 : i32 to index
    %131 = memref.load %arg1[%130] : memref<32xi32, #tpu.memory_space<smem>>
    %c0_i32_78 = arith.constant 0 : i32
    %c15_i32_79 = arith.constant 15 : i32
    %132 = arith.maxsi %c0_i32_78, %131 : i32
    %133 = arith.minsi %c15_i32_79, %132 : i32
    %134 = arith.index_cast %133 : i32 to index
    %c0_80 = arith.constant 0 : index
    %135 = vector.load %arg2[%134, %c0_80] : memref<16x128xf32, #tpu.memory_space<vmem>>, vector<1x128xf32>
    %c16_i32_81 = arith.constant 16 : i32
    %136 = arith.subi %131, %c16_i32_81 : i32
    %c0_i32_82 = arith.constant 0 : i32
    %c23_i32_83 = arith.constant 23 : i32
    %137 = arith.maxsi %c0_i32_82, %136 : i32
    %138 = arith.minsi %c23_i32_83, %137 : i32
    %c1_84 = arith.constant 1 : index
    %139 = arith.index_cast %138 : i32 to index
    %c0_85 = arith.constant 0 : index
    %140 = vector.load %arg5[%c1_84, %139, %c0_85] : memref<2x24x128xf32, #tpu.memory_space<vmem>>, vector<1x1x128xf32>
    %141 = vector.shape_cast %140 : vector<1x1x128xf32> to vector<1x128xf32>
    %c16_i32_86 = arith.constant 16 : i32
    %142 = arith.cmpi sge, %131, %c16_i32_86 : i32
    %143 = arith.select %142, %141, %135 : vector<1x128xf32>
    %c8 = arith.constant 8 : index
    %c0_87 = arith.constant 0 : index
    %144 = vector.load %arg8[%c8, %c0_87] : memref<16x128xf32, #tpu.memory_space<vmem>>, vector<1x128xf32>
    tpu.vector_store %arg8[%c8, %c0_87], %143 {strides = array<i32>} : memref<16x128xf32, #tpu.memory_space<vmem>>, vector<1x128xf32>,
    %c9_i32 = arith.constant 9 : i32
    %145 = arith.addi %0, %c9_i32 : i32
    %146 = arith.index_cast %145 : i32 to index
    %147 = memref.load %arg1[%146] : memref<32xi32, #tpu.memory_space<smem>>
    %c0_i32_88 = arith.constant 0 : i32
    %c15_i32_89 = arith.constant 15 : i32
    %148 = arith.maxsi %c0_i32_88, %147 : i32
    %149 = arith.minsi %c15_i32_89, %148 : i32
    %150 = arith.index_cast %149 : i32 to index
    %c0_90 = arith.constant 0 : index
    %151 = vector.load %arg2[%150, %c0_90] : memref<16x128xf32, #tpu.memory_space<vmem>>, vector<1x128xf32>
    %c16_i32_91 = arith.constant 16 : i32
    %152 = arith.subi %147, %c16_i32_91 : i32
    %c0_i32_92 = arith.constant 0 : i32
    %c23_i32_93 = arith.constant 23 : i32
    %153 = arith.maxsi %c0_i32_92, %152 : i32
    %154 = arith.minsi %c23_i32_93, %153 : i32
    %c1_94 = arith.constant 1 : index
    %155 = arith.index_cast %154 : i32 to index
    %c0_95 = arith.constant 0 : index
    %156 = vector.load %arg5[%c1_94, %155, %c0_95] : memref<2x24x128xf32, #tpu.memory_space<vmem>>, vector<1x1x128xf32>
    %157 = vector.shape_cast %156 : vector<1x1x128xf32> to vector<1x128xf32>
    %c16_i32_96 = arith.constant 16 : i32
    %158 = arith.cmpi sge, %147, %c16_i32_96 : i32
    %159 = arith.select %158, %157, %151 : vector<1x128xf32>
    %c9 = arith.constant 9 : index
    %c0_97 = arith.constant 0 : index
    %160 = vector.load %arg8[%c9, %c0_97] : memref<16x128xf32, #tpu.memory_space<vmem>>, vector<1x128xf32>
    tpu.vector_store %arg8[%c9, %c0_97], %159 {strides = array<i32>} : memref<16x128xf32, #tpu.memory_space<vmem>>, vector<1x128xf32>,
    %c10_i32 = arith.constant 10 : i32
    %161 = arith.addi %0, %c10_i32 : i32
    %162 = arith.index_cast %161 : i32 to index
    %163 = memref.load %arg1[%162] : memref<32xi32, #tpu.memory_space<smem>>
    %c0_i32_98 = arith.constant 0 : i32
    %c15_i32_99 = arith.constant 15 : i32
    %164 = arith.maxsi %c0_i32_98, %163 : i32
    %165 = arith.minsi %c15_i32_99, %164 : i32
    %166 = arith.index_cast %165 : i32 to index
    %c0_100 = arith.constant 0 : index
    %167 = vector.load %arg2[%166, %c0_100] : memref<16x128xf32, #tpu.memory_space<vmem>>, vector<1x128xf32>
    %c16_i32_101 = arith.constant 16 : i32
    %168 = arith.subi %163, %c16_i32_101 : i32
    %c0_i32_102 = arith.constant 0 : i32
    %c23_i32_103 = arith.constant 23 : i32
    %169 = arith.maxsi %c0_i32_102, %168 : i32
    %170 = arith.minsi %c23_i32_103, %169 : i32
    %c1_104 = arith.constant 1 : index
    %171 = arith.index_cast %170 : i32 to index
    %c0_105 = arith.constant 0 : index
    %172 = vector.load %arg5[%c1_104, %171, %c0_105] : memref<2x24x128xf32, #tpu.memory_space<vmem>>, vector<1x1x128xf32>
    %173 = vector.shape_cast %172 : vector<1x1x128xf32> to vector<1x128xf32>
    %c16_i32_106 = arith.constant 16 : i32
    %174 = arith.cmpi sge, %163, %c16_i32_106 : i32
    %175 = arith.select %174, %173, %167 : vector<1x128xf32>
    %c10 = arith.constant 10 : index
    %c0_107 = arith.constant 0 : index
    %176 = vector.load %arg8[%c10, %c0_107] : memref<16x128xf32, #tpu.memory_space<vmem>>, vector<1x128xf32>
    tpu.vector_store %arg8[%c10, %c0_107], %175 {strides = array<i32>} : memref<16x128xf32, #tpu.memory_space<vmem>>, vector<1x128xf32>,
    %c11_i32 = arith.constant 11 : i32
    %177 = arith.addi %0, %c11_i32 : i32
    %178 = arith.index_cast %177 : i32 to index
    %179 = memref.load %arg1[%178] : memref<32xi32, #tpu.memory_space<smem>>
    %c0_i32_108 = arith.constant 0 : i32
    %c15_i32_109 = arith.constant 15 : i32
    %180 = arith.maxsi %c0_i32_108, %179 : i32
    %181 = arith.minsi %c15_i32_109, %180 : i32
    %182 = arith.index_cast %181 : i32 to index
    %c0_110 = arith.constant 0 : index
    %183 = vector.load %arg2[%182, %c0_110] : memref<16x128xf32, #tpu.memory_space<vmem>>, vector<1x128xf32>
    %c16_i32_111 = arith.constant 16 : i32
    %184 = arith.subi %179, %c16_i32_111 : i32
    %c0_i32_112 = arith.constant 0 : i32
    %c23_i32_113 = arith.constant 23 : i32
    %185 = arith.maxsi %c0_i32_112, %184 : i32
    %186 = arith.minsi %c23_i32_113, %185 : i32
    %c1_114 = arith.constant 1 : index
    %187 = arith.index_cast %186 : i32 to index
    %c0_115 = arith.constant 0 : index
    %188 = vector.load %arg5[%c1_114, %187, %c0_115] : memref<2x24x128xf32, #tpu.memory_space<vmem>>, vector<1x1x128xf32>
    %189 = vector.shape_cast %188 : vector<1x1x128xf32> to vector<1x128xf32>
    %c16_i32_116 = arith.constant 16 : i32
    %190 = arith.cmpi sge, %179, %c16_i32_116 : i32
    %191 = arith.select %190, %189, %183 : vector<1x128xf32>
    %c11 = arith.constant 11 : index
    %c0_117 = arith.constant 0 : index
    %192 = vector.load %arg8[%c11, %c0_117] : memref<16x128xf32, #tpu.memory_space<vmem>>, vector<1x128xf32>
    tpu.vector_store %arg8[%c11, %c0_117], %191 {strides = array<i32>} : memref<16x128xf32, #tpu.memory_space<vmem>>, vector<1x128xf32>,
    %c12_i32 = arith.constant 12 : i32
    %193 = arith.addi %0, %c12_i32 : i32
    %194 = arith.index_cast %193 : i32 to index
    %195 = memref.load %arg1[%194] : memref<32xi32, #tpu.memory_space<smem>>
    %c0_i32_118 = arith.constant 0 : i32
    %c15_i32_119 = arith.constant 15 : i32
    %196 = arith.maxsi %c0_i32_118, %195 : i32
    %197 = arith.minsi %c15_i32_119, %196 : i32
    %198 = arith.index_cast %197 : i32 to index
    %c0_120 = arith.constant 0 : index
    %199 = vector.load %arg2[%198, %c0_120] : memref<16x128xf32, #tpu.memory_space<vmem>>, vector<1x128xf32>
    %c16_i32_121 = arith.constant 16 : i32
    %200 = arith.subi %195, %c16_i32_121 : i32
    %c0_i32_122 = arith.constant 0 : i32
    %c23_i32_123 = arith.constant 23 : i32
    %201 = arith.maxsi %c0_i32_122, %200 : i32
    %202 = arith.minsi %c23_i32_123, %201 : i32
    %c1_124 = arith.constant 1 : index
    %203 = arith.index_cast %202 : i32 to index
    %c0_125 = arith.constant 0 : index
    %204 = vector.load %arg5[%c1_124, %203, %c0_125] : memref<2x24x128xf32, #tpu.memory_space<vmem>>, vector<1x1x128xf32>
    %205 = vector.shape_cast %204 : vector<1x1x128xf32> to vector<1x128xf32>
    %c16_i32_126 = arith.constant 16 : i32
    %206 = arith.cmpi sge, %195, %c16_i32_126 : i32
    %207 = arith.select %206, %205, %199 : vector<1x128xf32>
    %c12 = arith.constant 12 : index
    %c0_127 = arith.constant 0 : index
    %208 = vector.load %arg8[%c12, %c0_127] : memref<16x128xf32, #tpu.memory_space<vmem>>, vector<1x128xf32>
    tpu.vector_store %arg8[%c12, %c0_127], %207 {strides = array<i32>} : memref<16x128xf32, #tpu.memory_space<vmem>>, vector<1x128xf32>,
    %c13_i32 = arith.constant 13 : i32
    %209 = arith.addi %0, %c13_i32 : i32
    %210 = arith.index_cast %209 : i32 to index
    %211 = memref.load %arg1[%210] : memref<32xi32, #tpu.memory_space<smem>>
    %c0_i32_128 = arith.constant 0 : i32
    %c15_i32_129 = arith.constant 15 : i32
    %212 = arith.maxsi %c0_i32_128, %211 : i32
    %213 = arith.minsi %c15_i32_129, %212 : i32
    %214 = arith.index_cast %213 : i32 to index
    %c0_130 = arith.constant 0 : index
    %215 = vector.load %arg2[%214, %c0_130] : memref<16x128xf32, #tpu.memory_space<vmem>>, vector<1x128xf32>
    %c16_i32_131 = arith.constant 16 : i32
    %216 = arith.subi %211, %c16_i32_131 : i32
    %c0_i32_132 = arith.constant 0 : i32
    %c23_i32_133 = arith.constant 23 : i32
    %217 = arith.maxsi %c0_i32_132, %216 : i32
    %218 = arith.minsi %c23_i32_133, %217 : i32
    %c1_134 = arith.constant 1 : index
    %219 = arith.index_cast %218 : i32 to index
    %c0_135 = arith.constant 0 : index
    %220 = vector.load %arg5[%c1_134, %219, %c0_135] : memref<2x24x128xf32, #tpu.memory_space<vmem>>, vector<1x1x128xf32>
    %221 = vector.shape_cast %220 : vector<1x1x128xf32> to vector<1x128xf32>
    %c16_i32_136 = arith.constant 16 : i32
    %222 = arith.cmpi sge, %211, %c16_i32_136 : i32
    %223 = arith.select %222, %221, %215 : vector<1x128xf32>
    %c13 = arith.constant 13 : index
    %c0_137 = arith.constant 0 : index
    %224 = vector.load %arg8[%c13, %c0_137] : memref<16x128xf32, #tpu.memory_space<vmem>>, vector<1x128xf32>
    tpu.vector_store %arg8[%c13, %c0_137], %223 {strides = array<i32>} : memref<16x128xf32, #tpu.memory_space<vmem>>, vector<1x128xf32>,
    %c14_i32 = arith.constant 14 : i32
    %225 = arith.addi %0, %c14_i32 : i32
    %226 = arith.index_cast %225 : i32 to index
    %227 = memref.load %arg1[%226] : memref<32xi32, #tpu.memory_space<smem>>
    %c0_i32_138 = arith.constant 0 : i32
    %c15_i32_139 = arith.constant 15 : i32
    %228 = arith.maxsi %c0_i32_138, %227 : i32
    %229 = arith.minsi %c15_i32_139, %228 : i32
    %230 = arith.index_cast %229 : i32 to index
    %c0_140 = arith.constant 0 : index
    %231 = vector.load %arg2[%230, %c0_140] : memref<16x128xf32, #tpu.memory_space<vmem>>, vector<1x128xf32>
    %c16_i32_141 = arith.constant 16 : i32
    %232 = arith.subi %227, %c16_i32_141 : i32
    %c0_i32_142 = arith.constant 0 : i32
    %c23_i32_143 = arith.constant 23 : i32
    %233 = arith.maxsi %c0_i32_142, %232 : i32
    %234 = arith.minsi %c23_i32_143, %233 : i32
    %c1_144 = arith.constant 1 : index
    %235 = arith.index_cast %234 : i32 to index
    %c0_145 = arith.constant 0 : index
    %236 = vector.load %arg5[%c1_144, %235, %c0_145] : memref<2x24x128xf32, #tpu.memory_space<vmem>>, vector<1x1x128xf32>
    %237 = vector.shape_cast %236 : vector<1x1x128xf32> to vector<1x128xf32>
    %c16_i32_146 = arith.constant 16 : i32
    %238 = arith.cmpi sge, %227, %c16_i32_146 : i32
    %239 = arith.select %238, %237, %231 : vector<1x128xf32>
    %c14 = arith.constant 14 : index
    %c0_147 = arith.constant 0 : index
    %240 = vector.load %arg8[%c14, %c0_147] : memref<16x128xf32, #tpu.memory_space<vmem>>, vector<1x128xf32>
    tpu.vector_store %arg8[%c14, %c0_147], %239 {strides = array<i32>} : memref<16x128xf32, #tpu.memory_space<vmem>>, vector<1x128xf32>,
    %c15_i32_148 = arith.constant 15 : i32
    %241 = arith.addi %0, %c15_i32_148 : i32
    %242 = arith.index_cast %241 : i32 to index
    %243 = memref.load %arg1[%242] : memref<32xi32, #tpu.memory_space<smem>>
    %c0_i32_149 = arith.constant 0 : i32
    %c15_i32_150 = arith.constant 15 : i32
    %244 = arith.maxsi %c0_i32_149, %243 : i32
    %245 = arith.minsi %c15_i32_150, %244 : i32
    %246 = arith.index_cast %245 : i32 to index
    %c0_151 = arith.constant 0 : index
    %247 = vector.load %arg2[%246, %c0_151] : memref<16x128xf32, #tpu.memory_space<vmem>>, vector<1x128xf32>
    %c16_i32_152 = arith.constant 16 : i32
    %248 = arith.subi %243, %c16_i32_152 : i32
    %c0_i32_153 = arith.constant 0 : i32
    %c23_i32_154 = arith.constant 23 : i32
    %249 = arith.maxsi %c0_i32_153, %248 : i32
    %250 = arith.minsi %c23_i32_154, %249 : i32
    %c1_155 = arith.constant 1 : index
    %251 = arith.index_cast %250 : i32 to index
    %c0_156 = arith.constant 0 : index
    %252 = vector.load %arg5[%c1_155, %251, %c0_156] : memref<2x24x128xf32, #tpu.memory_space<vmem>>, vector<1x1x128xf32>
    %253 = vector.shape_cast %252 : vector<1x1x128xf32> to vector<1x128xf32>
    %c16_i32_157 = arith.constant 16 : i32
    %254 = arith.cmpi sge, %243, %c16_i32_157 : i32
    %255 = arith.select %254, %253, %247 : vector<1x128xf32>
    %c15 = arith.constant 15 : index
    %c0_158 = arith.constant 0 : index
    %256 = vector.load %arg8[%c15, %c0_158] : memref<16x128xf32, #tpu.memory_space<vmem>>, vector<1x128xf32>
    tpu.vector_store %arg8[%c15, %c0_158], %255 {strides = array<i32>} : memref<16x128xf32, #tpu.memory_space<vmem>>, vector<1x128xf32>,
    %c0_159 = arith.constant 0 : index
    %c0_160 = arith.constant 0 : index
    %257 = vector.load %arg8[%c0_159, %c0_160] : memref<16x128xf32, #tpu.memory_space<vmem>>, vector<16x128xf32>
    %cst = arith.constant dense<0.000000e+00> : vector<16xf32>
    %258 = vector.multi_reduction <add>, %257, %cst [1] : vector<16x128xf32> to vector<16xf32>
    %259 = vector.shape_cast %258 : vector<16xf32> to vector<16x1xf32>
    %cst_161 = arith.constant 1.280000e+02 : f32
    %260 = vector.broadcast %cst_161 : f32 to vector<16x1xf32>
    %261 = arith.divf %259, %260 : vector<16x1xf32>
    %262 = vector.broadcast %261 : vector<16x1xf32> to vector<16x128xf32>
    %263 = arith.subf %257, %262 : vector<16x128xf32>
    %264 = arith.mulf %263, %263 : vector<16x128xf32>
    %cst_162 = arith.constant dense<0.000000e+00> : vector<16xf32>
    %265 = vector.multi_reduction <add>, %264, %cst_162 [1] : vector<16x128xf32> to vector<16xf32>
    %266 = vector.shape_cast %265 : vector<16xf32> to vector<16x1xf32>
    %cst_163 = arith.constant 1.280000e+02 : f32
    %267 = vector.broadcast %cst_163 : f32 to vector<16x1xf32>
    %268 = arith.divf %266, %267 : vector<16x1xf32>
    %269 = vector.broadcast %261 : vector<16x1xf32> to vector<16x128xf32>
    %270 = arith.subf %257, %269 : vector<16x128xf32>
    %cst_164 = arith.constant 9.99999996E-13 : f32
    %271 = vector.broadcast %cst_164 : f32 to vector<16x1xf32>
    %272 = arith.addf %268, %271 : vector<16x1xf32>
    %273 = math.rsqrt %272 : vector<16x1xf32>
    %274 = vector.broadcast %273 : vector<16x1xf32> to vector<16x128xf32>
    %275 = arith.mulf %270, %274 : vector<16x128xf32>
    %c0_165 = arith.constant 0 : index
    %c0_166 = arith.constant 0 : index
    %276 = vector.load %arg4[%c0_165, %c0_166] : memref<4x128xf32, #tpu.memory_space<vmem>>, vector<4x128xf32>
    %277 = vector.extract_strided_slice %276 {offsets = [0, 0], sizes = [1, 128], strides = [1, 1]} : vector<4x128xf32> to vector<1x128xf32>
    %278 = vector.broadcast %277 : vector<1x128xf32> to vector<16x128xf32>
    %279 = arith.mulf %275, %278 : vector<16x128xf32>
    %280 = vector.extract_strided_slice %276 {offsets = [1, 0], sizes = [1, 128], strides = [1, 1]} : vector<4x128xf32> to vector<1x128xf32>
    %281 = vector.broadcast %280 : vector<1x128xf32> to vector<16x128xf32>
    %282 = arith.addf %279, %281 : vector<16x128xf32>
    %283 = vector.extract_strided_slice %276 {offsets = [2, 0], sizes = [1, 128], strides = [1, 1]} : vector<4x128xf32> to vector<1x128xf32>
    %284 = vector.broadcast %283 : vector<1x128xf32> to vector<16x128xf32>
    %285 = arith.mulf %275, %284 : vector<16x128xf32>
    %286 = vector.extract_strided_slice %276 {offsets = [3, 0], sizes = [1, 128], strides = [1, 1]} : vector<4x128xf32> to vector<1x128xf32>
    %287 = vector.broadcast %286 : vector<1x128xf32> to vector<16x128xf32>
    %288 = arith.addf %285, %287 : vector<16x128xf32>
    %c0_167 = arith.constant 0 : index
    %c0_168 = arith.constant 0 : index
    %289 = vector.load %arg6[%c0_167, %c0_168] : memref<16x1xf32, #tpu.memory_space<vmem>>, vector<16x1xf32>
    %cst_169 = arith.constant 5.000000e-01 : f32
    %290 = vector.broadcast %cst_169 : f32 to vector<16x1xf32>
    %291 = arith.cmpf ogt, %289, %290 : vector<16x1xf32>
    %292 = vector.shape_cast %291 : vector<16x1xi1> to vector<16x1xi1>
    %293 = vector.broadcast %292 : vector<16x1xi1> to vector<16x128xi1>
    %294 = arith.select %293, %288, %282 : vector<16x128xi1>, vector<16x128xf32>
    %c1_170 = arith.constant 1 : index
    %c0_171 = arith.constant 0 : index
    %c0_172 = arith.constant 0 : index
    %295 = vector.load %arg3[%c1_170, %c0_171, %c0_172] : memref<2x16x128xf32, #tpu.memory_space<vmem>>, vector<1x16x128xf32>
    %296 = vector.shape_cast %295 : vector<1x16x128xf32> to vector<16x128xf32>
    %c0_173 = arith.constant 0 : index
    %c0_174 = arith.constant 0 : index
    %c0_175 = arith.constant 0 : index
    %297 = vector.load %arg3[%c0_173, %c0_174, %c0_175] : memref<2x16x128xf32, #tpu.memory_space<vmem>>, vector<1x16x128xf32>
    %298 = vector.shape_cast %297 : vector<1x16x128xf32> to vector<16x128xf32>
    %299 = vector.shape_cast %291 : vector<16x1xi1> to vector<16x1xi1>
    %300 = vector.broadcast %299 : vector<16x1xi1> to vector<16x128xi1>
    %301 = arith.select %300, %296, %298 : vector<16x128xi1>, vector<16x128xf32>
    %302 = arith.addf %294, %301 : vector<16x128xf32>
    %c0_176 = arith.constant 0 : index
    %c0_177 = arith.constant 0 : index
    %303 = vector.load %arg7[%c0_176, %c0_177] : memref<16x128xf32, #tpu.memory_space<vmem>>, vector<16x128xf32>
    tpu.vector_store %arg7[%c0_176, %c0_177], %302 {strides = array<i32>} : memref<16x128xf32, #tpu.memory_space<vmem>>, vector<16x128xf32>,
    return
  }
  func.func @transform_0(%arg0: i32, %arg1: memref<32xi32, #tpu.memory_space<smem>>) -> (i32, i32) {
    %c0_i32 = arith.constant 0 : i32
    %c0_i32_0 = arith.constant 0 : i32
    %c0_i32_1 = arith.constant 0 : i32
    return %c0_i32, %c0_i32_0 : i32, i32
  }
  func.func @transform_1(%arg0: i32, %arg1: memref<32xi32, #tpu.memory_space<smem>>) -> (i32, i32, i32) {
    %c0_i32 = arith.constant 0 : i32
    %c0_i32_0 = arith.constant 0 : i32
    %c0_i32_1 = arith.constant 0 : i32
    %c0_i32_2 = arith.constant 0 : i32
    return %c0_i32, %c0_i32_0, %c0_i32_1 : i32, i32, i32
  }
  func.func @transform_2(%arg0: i32, %arg1: memref<32xi32, #tpu.memory_space<smem>>) -> (i32, i32) {
    %c0_i32 = arith.constant 0 : i32
    %c0_i32_0 = arith.constant 0 : i32
    %c0_i32_1 = arith.constant 0 : i32
    return %c0_i32, %c0_i32_0 : i32, i32
  }
  func.func @transform_3(%arg0: i32, %arg1: memref<32xi32, #tpu.memory_space<smem>>) -> (i32, i32, i32) {
    %c0_i32 = arith.constant 0 : i32
    %c0_i32_0 = arith.constant 0 : i32
    %c0_i32_1 = arith.constant 0 : i32
    return %arg0, %c0_i32, %c0_i32_0 : i32, i32, i32
  }
  func.func @transform_4(%arg0: i32, %arg1: memref<32xi32, #tpu.memory_space<smem>>) -> (i32, i32) {
    %c0_i32 = arith.constant 0 : i32
    %c0_i32_0 = arith.constant 0 : i32
    return %arg0, %c0_i32 : i32, i32
  }
  func.func @transform_5(%arg0: i32, %arg1: memref<32xi32, #tpu.memory_space<smem>>) -> (i32, i32) {
    %c0_i32 = arith.constant 0 : i32
    %c0_i32_0 = arith.constant 0 : i32
    return %arg0, %c0_i32 : i32, i32
  }
}

</mosaic_0001>

<llo_original>
// kernel: tpu_custom_call.1
$region0: #{tpu_custom_call.1}
  #allocation0 [shape = 'u32[]', space=smem, size = 0x4, offset = 0x4, fixed_abs, tag = 'smem constant byte address 0x4 - core index']
  #allocation1 [shape = 'u32[72,128]{1,0:T(1,128)}', space=vmem, size = 0x9000, scoped, tag = 'internal scratch']
  #allocation2 [shape = 'f32[16,128]{1,0:T(8,128)}', space=vmem, size = 0x2000, scoped, tag = 'scratch operand']
  #allocation3 [shape = 's32[1]{0}', space=sflag, size = 0x4, scoped, tag = 'scoped memory for tpu_custom_call.1']
  #allocation4 [shape = 'u8[512]{0}', space=smem, size = 0x200, scoped, tag = 'prefetched SMEM operand 0']
  %s0 = inlined_call_operand.vmem [shape: s32[32], index: 0, kind: input, shape index: {}]
  %s1 = inlined_call_operand.hbm [shape: f32[16,128], index: 1, kind: input, shape index: {}]
  %s2 = inlined_call_operand.vmem [shape: f32[2,16,128], index: 2, kind: input, shape index: {}]
  %s3 = inlined_call_operand.hbm [shape: f32[4,128], index: 3, kind: input, shape index: {}]
  %s4 = inlined_call_operand.hbm [shape: f32[4,24,128], index: 4, kind: input, shape index: {}]
  %s5 = inlined_call_operand.vmem [shape: f32[32,1], index: 5, kind: input, shape index: {}]
  %s6 = inlined_call_operand.hbm [shape: f32[32,128], index: 6, kind: output, shape index: {}]
  %s7 = sld [smem:[#allocation0]]
  $region65: #{tpu_custom_call.1} parent=0
    _
  %s9 = ssub.s32 1, %s7
  %s10 = scalar_select 0, %s9, %s7
  %s12 = sshll.u32 %s0, 4
  %s13 = int_to_ptr.vmem [resolvable:$true] %s12
  %15 = dma.vmem_to_smem %s13, 16, [#allocation4], [#allocation3]
  %17 = dma.done [#allocation3], 16
  %18 = sfence
  $region1: #{tpu_custom_call.1} parent=0
    #allocation5 [shape = 'u8[8192]{0}', space=vmem, size = 0x2000, scoped, tag = 'input window, operand 1, single buffered']
    #allocation6 [shape = 's32[2]{0}', space=sflag, size = 0x8, scoped, tag = 'scoped memory for tpu_custom_call.1']
    #allocation7 [shape = 's32[2]{0}', space=sflag, size = 0x8, scoped, tag = 'scoped memory for tpu_custom_call.1']
    #allocation8 [shape = 'u8[2048]{0}', space=vmem, size = 0x800, scoped, tag = 'input window, operand 3, single buffered']
    #allocation9 [shape = 's32[1]{0}', space=sflag, size = 0x4, scoped, tag = 'scoped memory for tpu_custom_call.1']
    #allocation10 [shape = 'u8[49152]{0}', space=vmem, size = 0xc000, scoped, tag = 'input window, operand 4']
    #allocation11 [shape = 'u8[16384]{0}', space=vmem, size = 0x4000, scoped, tag = 'output window, operand 0']
    %19 = vsyncpa [#allocation6], 0
    %20 = vsyncpa [#allocation9], 0
    %21 = vsyncpa [#allocation7], 0
    %s22 = scalar_lea.sflag [#allocation7], 1
    %23 = vsyncpa %s22, 0
    loop: start=0, step=1, limit=4
    $region2: #{tpu_custom_call.1} parent=1 // loop_pre_header
      _
    $region3: #{tpu_custom_call.1} parent=1 // loop_header
      %s25 = sphi 0, %s29
      %p26 = scmp.ge.s32.totalorder %s25, 4
      %s33 = sphi 0, %s33
      %s35 = sphi 0, %s33
      %s36 = sphi 0, %s35
      %s50 = sphi 0, %s36
      %s54 = sphi 0, %s54
      %s56 = sphi 0, %s54
      %s57 = sphi 0, %s56
      %s71 = sphi 0, %s57
      %s75 = sphi 0, %s75
      %s77 = sphi 0, %s75
      %s78 = sphi 0, %s77
      %s92 = sphi 0, %s78
      %s98 = sphi 0, %s100
      %s101 = sphi 0, %s98
      %s102 = sphi 0, %s101
      %s118 = sphi 0, %s102
      %s124 = sphi 0, %s126
      %s127 = sphi 0, %s124
      %s128 = sphi 0, %s127
      %s144 = sphi 0, %s128
      %s150 = sphi 0, %s152
      %s153 = sphi 0, %s150
      %s154 = sphi 0, %s153
      %s170 = sphi 0, %s154
    $region4: #{tpu_custom_call.1} parent=1 // loop_header_branch
      %28 = sbr.rel (%p26) target = $region8
    $region5: #{tpu_custom_call.1} parent=1 // loop_body
      %s30 = ssub.s32 %s25, 1
      %s31 = ssub.s32 %s25, 2
      %s32 = sadd.s32 %s25, 1
      %s34 = sadd.s32 %s33, 1
      %p37 = scmp.eq.s32.totalorder %s25, 1
      %p38 = scmp.ne.s32.totalorder %s33, %s35
      %p39 = scmp.eq.s32.totalorder %s25, 0
      %p40 = por %p38, %p39
      %p41 = scmp.ne.s32.totalorder %s33, %s35
      %p42 = scmp.eq.s32.totalorder %s30, 1
      %p43 = por %p41, %p42
      %p44 = scmp.ne.s32.totalorder %s35, %s36
      %p45 = scmp.eq.s32.totalorder %s30, 0
      %p46 = por %p44, %p45
      %p47 = scmp.ne.s32.totalorder %s35, %s36
      %p48 = scmp.eq.s32.totalorder %s31, 1
      %p49 = por %p47, %p48
      %p51 = scmp.ne.s32.totalorder %s36, %s50
      %p52 = scmp.eq.s32.totalorder %s31, 0
      %p53 = por %p51, %p52
      %s55 = sadd.s32 %s54, 1
      %p58 = scmp.eq.s32.totalorder %s25, 1
      %p59 = scmp.ne.s32.totalorder %s54, %s56
      %p60 = scmp.eq.s32.totalorder %s25, 0
      %p61 = por %p59, %p60
      %p62 = scmp.ne.s32.totalorder %s54, %s56
      %p63 = scmp.eq.s32.totalorder %s30, 1
      %p64 = por %p62, %p63
      %p65 = scmp.ne.s32.totalorder %s56, %s57
      %p66 = scmp.eq.s32.totalorder %s30, 0
      %p67 = por %p65, %p66
      %p68 = scmp.ne.s32.totalorder %s56, %s57
      %p69 = scmp.eq.s32.totalorder %s31, 1
      %p70 = por %p68, %p69
      %p72 = scmp.ne.s32.totalorder %s57, %s71
      %p73 = scmp.eq.s32.totalorder %s31, 0
      %p74 = por %p72, %p73
      %s76 = sadd.s32 %s75, 1
      %p79 = scmp.eq.s32.totalorder %s25, 1
      %p80 = scmp.ne.s32.totalorder %s75, %s77
      %p81 = scmp.eq.s32.totalorder %s25, 0
      %p82 = por %p80, %p81
      %p83 = scmp.ne.s32.totalorder %s75, %s77
      %p84 = scmp.eq.s32.totalorder %s30, 1
      %p85 = por %p83, %p84
      %p86 = scmp.ne.s32.totalorder %s77, %s78
      %p87 = scmp.eq.s32.totalorder %s30, 0
      %p88 = por %p86, %p87
      %p89 = scmp.ne.s32.totalorder %s77, %s78
      %p90 = scmp.eq.s32.totalorder %s31, 1
      %p91 = por %p89, %p90
      %p93 = scmp.ne.s32.totalorder %s78, %s92
      %p94 = scmp.eq.s32.totalorder %s31, 0
      %p95 = por %p93, %p94
      %s96 = ssub.s32 %s25, %s32
      %p97 = scmp.eq.s32.totalorder %s96, 0
      %s99 = sadd.s32 %s98, 1
      %s100 = scalar_select %p97, %s98, %s99
      %p103 = pneg %p97
      %p104 = scmp.eq.s32.totalorder %s25, 1
      %p105 = por %p103, %p104
      %p106 = scmp.ne.s32.totalorder %s98, %s101
      %p107 = scmp.eq.s32.totalorder %s25, 0
      %p108 = por %p106, %p107
      %p109 = scmp.ne.s32.totalorder %s98, %s101
      %p110 = scmp.eq.s32.totalorder %s30, 1
      %p111 = por %p109, %p110
      %p112 = scmp.ne.s32.totalorder %s101, %s102
      %p113 = scmp.eq.s32.totalorder %s30, 0
      %p114 = por %p112, %p113
      %p115 = scmp.ne.s32.totalorder %s101, %s102
      %p116 = scmp.eq.s32.totalorder %s31, 1
      %p117 = por %p115, %p116
      %p119 = scmp.ne.s32.totalorder %s102, %s118
      %p120 = scmp.eq.s32.totalorder %s31, 0
      %p121 = por %p119, %p120
      %s122 = ssub.s32 %s25, %s32
      %p123 = scmp.eq.s32.totalorder %s122, 0
      %s125 = sadd.s32 %s124, 1
      %s126 = scalar_select %p123, %s124, %s125
      %p129 = pneg %p123
      %p130 = scmp.eq.s32.totalorder %s25, 1
      %p131 = por %p129, %p130
      %p132 = scmp.ne.s32.totalorder %s124, %s127
      %p133 = scmp.eq.s32.totalorder %s25, 0
      %p134 = por %p132, %p133
      %p135 = scmp.ne.s32.totalorder %s124, %s127
      %p136 = scmp.eq.s32.totalorder %s30, 1
      %p137 = por %p135, %p136
      %p138 = scmp.ne.s32.totalorder %s127, %s128
      %p139 = scmp.eq.s32.totalorder %s30, 0
      %p140 = por %p138, %p139
      %p141 = scmp.ne.s32.totalorder %s127, %s128
      %p142 = scmp.eq.s32.totalorder %s31, 1
      %p143 = por %p141, %p142
      %p145 = scmp.ne.s32.totalorder %s128, %s144
      %p146 = scmp.eq.s32.totalorder %s31, 0
      %p147 = por %p145, %p146
      %s148 = ssub.s32 %s25, %s32
      %p149 = scmp.eq.s32.totalorder %s148, 0
      %s151 = sadd.s32 %s150, 1
      %s152 = scalar_select %p149, %s150, %s151
      %p155 = pneg %p149
      %p156 = scmp.eq.s32.totalorder %s25, 1
      %p157 = por %p155, %p156
      %p158 = scmp.ne.s32.totalorder %s150, %s153
      %p159 = scmp.eq.s32.totalorder %s25, 0
      %p160 = por %p158, %p159
      %p161 = scmp.ne.s32.totalorder %s150, %s153
      %p162 = scmp.eq.s32.totalorder %s30, 1
      %p163 = por %p161, %p162
      %p164 = scmp.ne.s32.totalorder %s153, %s154
      %p165 = scmp.eq.s32.totalorder %s30, 0
      %p166 = por %p164, %p165
      %p167 = scmp.ne.s32.totalorder %s153, %s154
      %p168 = scmp.eq.s32.totalorder %s31, 1
      %p169 = por %p167, %p168
      %p171 = scmp.ne.s32.totalorder %s154, %s170
      %p172 = scmp.eq.s32.totalorder %s31, 0
      %p173 = por %p171, %p172
      %p174 = scmp.le.s32.totalorder 1, %s25
      %p175 = scmp.lt.s32.totalorder %s25, 3
      %p176 = pnand %p174, %p175
      %p177 = pneg %p176
      // Predicated region
      $region9: #{tpu_custom_call.1} parent=5 // pred_check
        _
      $region10: #{tpu_custom_call.1} parent=5 // pred_check_branch
        %179 = sbr.rel (%p176) target = $region12
      $region11: #{tpu_custom_call.1} parent=5 // pred_region
        %s180 = ssub.s32 %s25, 1
        // Predicated region
        $region13: #{tpu_custom_call.1} parent=11 // pred_check
          %p181 = pneg %p46
        $region14: #{tpu_custom_call.1} parent=11 // pred_check_branch
          %183 = sbr.rel (%p181) target = $region16
        $region15: #{tpu_custom_call.1} parent=11 // pred_region
          %185 = vsyncadd [#allocation6], 0
          %s186 = sshll.u32 %s1, 4
          %s187 = int_to_ptr.hbm [resolvable:$true] %s186
          %s188 = sshll.u32 [#allocation5], 4
          %s189 = int_to_ptr.vmem [resolvable:$true] %s188
          %194 = dma.hbm_to_vmem [thread:$0]  %s187, 256, %s189, [#allocation6], 128, 128, 8
        $region16: #{tpu_custom_call.1} parent=11 // pred_fallthru
          _
        // Predicated region
        $region17: #{tpu_custom_call.1} parent=11 // pred_check
          %p195 = pneg %p67
        $region18: #{tpu_custom_call.1} parent=11 // pred_check_branch
          %197 = sbr.rel (%p195) target = $region20
        $region19: #{tpu_custom_call.1} parent=11 // pred_region
          _
        $region20: #{tpu_custom_call.1} parent=11 // pred_fallthru
          _
        // Predicated region
        $region21: #{tpu_custom_call.1} parent=11 // pred_check
          %p198 = pneg %p88
        $region22: #{tpu_custom_call.1} parent=11 // pred_check_branch
          %200 = sbr.rel (%p198) target = $region24
        $region23: #{tpu_custom_call.1} parent=11 // pred_region
          %202 = vsyncadd [#allocation9], 0
          %s204 = sshll.u32 %s3, 4
          %s205 = int_to_ptr.hbm [resolvable:$true] %s204
          %s206 = sshll.u32 [#allocation8], 4
          %s207 = int_to_ptr.vmem [resolvable:$true] %s206
          %209 = dma.hbm_to_vmem [thread:$0]  %s205, 64, %s207, [#allocation9]
        $region24: #{tpu_custom_call.1} parent=11 // pred_fallthru
          _
      $region12: #{tpu_custom_call.1} parent=5 // pred_fallthru
        _
      %p210 = scmp.lt.s32.totalorder %s25, 2
      // Predicated region
      $region25: #{tpu_custom_call.1} parent=5 // pred_check
        %p211 = pneg %p210
      $region26: #{tpu_custom_call.1} parent=5 // pred_check_branch
        %213 = sbr.rel (%p211) target = $region28
      $region27: #{tpu_custom_call.1} parent=5 // pred_region
        // Predicated region
        $region29: #{tpu_custom_call.1} parent=27 // pred_check
          %p214 = pneg %p108
        $region30: #{tpu_custom_call.1} parent=27 // pred_check_branch
          %216 = sbr.rel (%p214) target = $region32
        $region31: #{tpu_custom_call.1} parent=27 // pred_region
          %s217 = sand.u32 %s25, 1
          %s218 = scalar_lea.sflag [#allocation6], %s217
          %s219 = sand.u32 %s98, 1
          %s220 = smul.addr %s219, 48
          %s221 = scalar_lea.vmem [#allocation10], %s220
          %s222 = smul.u32 2, %s25
          %224 = vsyncadd %s218, 0
          %s225 = smul.addr %s222, 3
          %s226 = smul.addr %s225, 8
          %s227 = scalar_lea.hbm %s4, %s226
          %s228 = sshll.u32 %s227, 4
          %s229 = int_to_ptr.hbm [resolvable:$true] %s228
          %s230 = sshll.u32 %s221, 4
          %s231 = int_to_ptr.vmem [resolvable:$true] %s230
          %236 = dma.hbm_to_vmem [thread:$0]  %s229, 768, %s231, %s218, 128, 128, 8
        $region32: #{tpu_custom_call.1} parent=27 // pred_fallthru
          _
        // Predicated region
        $region33: #{tpu_custom_call.1} parent=27 // pred_check
          %p237 = pneg %p134
        $region34: #{tpu_custom_call.1} parent=27 // pred_check_branch
          %239 = sbr.rel (%p237) target = $region36
        $region35: #{tpu_custom_call.1} parent=27 // pred_region
          %s240 = smul.u32 2, %s25
          %p241 = scmp.lt.s32.totalorder %s240, 3
          %s242 = scalar_select %p241, %s240, 3
          %s243 = smul.addr %s242, 8
          %s244 = scalar_lea.vmem %s5, %s243
          %s245 = smul.u32 2, %s25
        $region36: #{tpu_custom_call.1} parent=27 // pred_fallthru
          _
      $region28: #{tpu_custom_call.1} parent=5 // pred_fallthru
        _
      %p246 = scmp.le.s32.totalorder 1, %s25
      %p247 = scmp.lt.s32.totalorder %s25, 3
      %p248 = pnand %p246, %p247
      %p249 = pneg %p248
      // Predicated region
      $region37: #{tpu_custom_call.1} parent=5 // pred_check
        _
      $region38: #{tpu_custom_call.1} parent=5 // pred_check_branch
        %251 = sbr.rel (%p248) target = $region40
      $region39: #{tpu_custom_call.1} parent=5 // pred_region
        %s252 = ssub.s32 %s25, 1
        // Predicated region
        $region41: #{tpu_custom_call.1} parent=39 // pred_check
          %p253 = pneg %p46
        $region42: #{tpu_custom_call.1} parent=39 // pred_check_branch
          %255 = sbr.rel (%p253) target = $region44
        $region43: #{tpu_custom_call.1} parent=39 // pred_region
          %257 = dma.done [#allocation6], 256
        $region44: #{tpu_custom_call.1} parent=39 // pred_fallthru
          _
        // Predicated region
        $region45: #{tpu_custom_call.1} parent=39 // pred_check
          %p258 = pneg %p88
        $region46: #{tpu_custom_call.1} parent=39 // pred_check_branch
          %260 = sbr.rel (%p258) target = $region48
        $region47: #{tpu_custom_call.1} parent=39 // pred_region
          %262 = dma.done [#allocation9], 64
        $region48: #{tpu_custom_call.1} parent=39 // pred_fallthru
          _
        %s263 = sand.u32 %s30, 1
        %s264 = scalar_lea.sflag [#allocation6], %s263
        %s265 = sand.u32 %s101, 1
        %s266 = smul.addr %s265, 48
        %s267 = scalar_lea.vmem [#allocation10], %s266
        // Predicated region
        $region49: #{tpu_custom_call.1} parent=39 // pred_check
          %p268 = pneg %p114
        $region50: #{tpu_custom_call.1} parent=39 // pred_check_branch
          %270 = sbr.rel (%p268) target = $region52
        $region51: #{tpu_custom_call.1} parent=39 // pred_region
          %272 = dma.done %s264, 768
        $region52: #{tpu_custom_call.1} parent=39 // pred_fallthru
          _
        %p273 = pneg %p46
        %p274 = pneg %p43
        %p275 = pneg %p67
        %p276 = pneg %p64
        %p277 = pneg %p88
        %p278 = pneg %p85
        %s279 = sand.u32 %s30, 1
        %s280 = scalar_lea.sflag [#allocation6], %s279
        %s281 = sand.u32 %s101, 1
        %s282 = smul.addr %s281, 48
        %s283 = scalar_lea.vmem [#allocation10], %s282
        %p284 = pneg %p114
        %p285 = pneg %p111
        %s286 = smul.u32 2, %s30
        %p287 = scmp.lt.s32.totalorder %s286, 3
        %s288 = scalar_select %p287, %s286, 3
        %s289 = smul.addr %s288, 8
        %s290 = scalar_lea.vmem %s5, %s289
        %p291 = pneg %p140
        %p292 = pneg %p137
        %p293 = pneg %p166
        %p294 = pneg %p163
        %s295 = sand.u32 %s153, 1
        %s296 = scalar_lea.sflag [#allocation7], %s295
        %s297 = sand.u32 %s153, 1
        %s298 = smul.addr %s297, 16
        %s299 = scalar_lea.vmem [#allocation11], %s298
        %s300 = smul.u32 2, %s30
        %s301 = smul.u32 2, %s30
        %p302 = scmp.lt.s32.totalorder %s301, 3
        %s303 = scalar_select %p302, %s301, 3
        %s304 = smul.addr %s303, 8
        %s305 = scalar_lea.vmem %s5, %s304
        %s306 = smul.u32 2, %s30
        %s307 = smul.u32 2, %s30
        %s308 = smul.u32 %s30, 16
        %s309 = sld [smem:[#allocation4 + %s308]]
        %p310 = scmp.gt.s32.totalorder %s309, 0
        %s311 = scalar_select %p310, %s309, 0
        %p312 = scmp.lt.s32.totalorder %s311, 15
        %s313 = scalar_select %p312, %s311, 15
        %s314 = scalar_lea.vmem [#allocation5], %s313
        %v315 = vld [vmem:[%s314] sm:$0x1]
        %s316 = ssub.s32 %s309, 16
        %p317 = scmp.gt.s32.totalorder %s316, 0
        %s318 = scalar_select %p317, %s316, 0
        %p319 = scmp.lt.s32.totalorder %s318, 23
        %s320 = scalar_select %p319, %s318, 23
        %s321 = scalar_lea.vmem %s267, %s320 [#allocation10]
        %v322 = vld [vmem:[%s321] sm:$0x1]
        %p323 = scmp.ge.s32.totalorder %s309, 16
        %s324 = scalar_select %p323, 1, 0
        %v325 = vstv %s324
        %vm326 = vcmp.eq.s32.totalorder %v325, 1
        %v327 = vsel %vm326, %v322, %v315
        %328 = vst [vmem:[#allocation2] sm:$0x1] %v327
        %s329 = sadd.s32 %s308, 1
        %s330 = sld [smem:[#allocation4 + %s329]]
        %p331 = scmp.gt.s32.totalorder %s330, 0
        %s332 = scalar_select %p331, %s330, 0
        %p333 = scmp.lt.s32.totalorder %s332, 15
        %s334 = scalar_select %p333, %s332, 15
        %s335 = scalar_lea.vmem [#allocation5], %s334
        %v336 = vld [vmem:[%s335] sm:$0x1]
        %s337 = ssub.s32 %s330, 16
        %p338 = scmp.gt.s32.totalorder %s337, 0
        %s339 = scalar_select %p338, %s337, 0
        %p340 = scmp.lt.s32.totalorder %s339, 23
        %s341 = scalar_select %p340, %s339, 23
        %s342 = scalar_lea.vmem %s267, %s341 [#allocation10]
        %v343 = vld [vmem:[%s342] sm:$0x1]
        %p344 = scmp.ge.s32.totalorder %s330, 16
        %s345 = scalar_select %p344, 1, 0
        %v346 = vstv %s345
        %vm347 = vcmp.eq.s32.totalorder %v346, 1
        %v348 = vsel %vm347, %v343, %v336
        %349 = vst [vmem:[#allocation2 + $0x1] sm:$0x1] %v348
        %s350 = sadd.s32 %s308, 2
        %s351 = sld [smem:[#allocation4 + %s350]]
        %p352 = scmp.gt.s32.totalorder %s351, 0
        %s353 = scalar_select %p352, %s351, 0
        %p354 = scmp.lt.s32.totalorder %s353, 15
        %s355 = scalar_select %p354, %s353, 15
        %s356 = scalar_lea.vmem [#allocation5], %s355
        %v357 = vld [vmem:[%s356] sm:$0x1]
        %s358 = ssub.s32 %s351, 16
        %p359 = scmp.gt.s32.totalorder %s358, 0
        %s360 = scalar_select %p359, %s358, 0
        %p361 = scmp.lt.s32.totalorder %s360, 23
        %s362 = scalar_select %p361, %s360, 23
        %s363 = scalar_lea.vmem %s267, %s362 [#allocation10]
        %v364 = vld [vmem:[%s363] sm:$0x1]
        %p365 = scmp.ge.s32.totalorder %s351, 16
        %s366 = scalar_select %p365, 1, 0
        %v367 = vstv %s366
        %vm368 = vcmp.eq.s32.totalorder %v367, 1
        %v369 = vsel %vm368, %v364, %v357
        %370 = vst [vmem:[#allocation2 + $0x2] sm:$0x1] %v369
        %s371 = sadd.s32 %s308, 3
        %s372 = sld [smem:[#allocation4 + %s371]]
        %p373 = scmp.gt.s32.totalorder %s372, 0
        %s374 = scalar_select %p373, %s372, 0
        %p375 = scmp.lt.s32.totalorder %s374, 15
        %s376 = scalar_select %p375, %s374, 15
        %s377 = scalar_lea.vmem [#allocation5], %s376
        %v378 = vld [vmem:[%s377] sm:$0x1]
        %s379 = ssub.s32 %s372, 16
        %p380 = scmp.gt.s32.totalorder %s379, 0
        %s381 = scalar_select %p380, %s379, 0
        %p382 = scmp.lt.s32.totalorder %s381, 23
        %s383 = scalar_select %p382, %s381, 23
        %s384 = scalar_lea.vmem %s267, %s383 [#allocation10]
        %v385 = vld [vmem:[%s384] sm:$0x1]
        %p386 = scmp.ge.s32.totalorder %s372, 16
        %s387 = scalar_select %p386, 1, 0
        %v388 = vstv %s387
        %vm389 = vcmp.eq.s32.totalorder %v388, 1
        %v390 = vsel %vm389, %v385, %v378
        %391 = vst [vmem:[#allocation2 + $0x3] sm:$0x1] %v390
        %s392 = sadd.s32 %s308, 4
        %s393 = sld [smem:[#allocation4 + %s392]]
        %p394 = scmp.gt.s32.totalorder %s393, 0
        %s395 = scalar_select %p394, %s393, 0
        %p396 = scmp.lt.s32.totalorder %s395, 15
        %s397 = scalar_select %p396, %s395, 15
        %s398 = scalar_lea.vmem [#allocation5], %s397
        %v399 = vld [vmem:[%s398] sm:$0x1]
        %s400 = ssub.s32 %s393, 16
        %p401 = scmp.gt.s32.totalorder %s400, 0
        %s402 = scalar_select %p401, %s400, 0
        %p403 = scmp.lt.s32.totalorder %s402, 23
        %s404 = scalar_select %p403, %s402, 23
        %s405 = scalar_lea.vmem %s267, %s404 [#allocation10]
        %v406 = vld [vmem:[%s405] sm:$0x1]
        %p407 = scmp.ge.s32.totalorder %s393, 16
        %s408 = scalar_select %p407, 1, 0
        %v409 = vstv %s408
        %vm410 = vcmp.eq.s32.totalorder %v409, 1
        %v411 = vsel %vm410, %v406, %v399
        %412 = vst [vmem:[#allocation2 + $0x4] sm:$0x1] %v411
        %s413 = sadd.s32 %s308, 5
        %s414 = sld [smem:[#allocation4 + %s413]]
        %p415 = scmp.gt.s32.totalorder %s414, 0
        %s416 = scalar_select %p415, %s414, 0
        %p417 = scmp.lt.s32.totalorder %s416, 15
        %s418 = scalar_select %p417, %s416, 15
        %s419 = scalar_lea.vmem [#allocation5], %s418
        %v420 = vld [vmem:[%s419] sm:$0x1]
        %s421 = ssub.s32 %s414, 16
        %p422 = scmp.gt.s32.totalorder %s421, 0
        %s423 = scalar_select %p422, %s421, 0
        %p424 = scmp.lt.s32.totalorder %s423, 23
        %s425 = scalar_select %p424, %s423, 23
        %s426 = scalar_lea.vmem %s267, %s425 [#allocation10]
        %v427 = vld [vmem:[%s426] sm:$0x1]
        %p428 = scmp.ge.s32.totalorder %s414, 16
        %s429 = scalar_select %p428, 1, 0
        %v430 = vstv %s429
        %vm431 = vcmp.eq.s32.totalorder %v430, 1
        %v432 = vsel %vm431, %v427, %v420
        %433 = vst [vmem:[#allocation2 + $0x5] sm:$0x1] %v432
        %s434 = sadd.s32 %s308, 6
        %s435 = sld [smem:[#allocation4 + %s434]]
        %p436 = scmp.gt.s32.totalorder %s435, 0
        %s437 = scalar_select %p436, %s435, 0
        %p438 = scmp.lt.s32.totalorder %s437, 15
        %s439 = scalar_select %p438, %s437, 15
        %s440 = scalar_lea.vmem [#allocation5], %s439
        %v441 = vld [vmem:[%s440] sm:$0x1]
        %s442 = ssub.s32 %s435, 16
        %p443 = scmp.gt.s32.totalorder %s442, 0
        %s444 = scalar_select %p443, %s442, 0
        %p445 = scmp.lt.s32.totalorder %s444, 23
        %s446 = scalar_select %p445, %s444, 23
        %s447 = scalar_lea.vmem %s267, %s446 [#allocation10]
        %v448 = vld [vmem:[%s447] sm:$0x1]
        %p449 = scmp.ge.s32.totalorder %s435, 16
        %s450 = scalar_select %p449, 1, 0
        %v451 = vstv %s450
        %vm452 = vcmp.eq.s32.totalorder %v451, 1
        %v453 = vsel %vm452, %v448, %v441
        %454 = vst [vmem:[#allocation2 + $0x6] sm:$0x1] %v453
        %s455 = sadd.s32 %s308, 7
        %s456 = sld [smem:[#allocation4 + %s455]]
        %p457 = scmp.gt.s32.totalorder %s456, 0
        %s458 = scalar_select %p457, %s456, 0
        %p459 = scmp.lt.s32.totalorder %s458, 15
        %s460 = scalar_select %p459, %s458, 15
        %s461 = scalar_lea.vmem [#allocation5], %s460
        %v462 = vld [vmem:[%s461] sm:$0x1]
        %s463 = ssub.s32 %s456, 16
        %p464 = scmp.gt.s32.totalorder %s463, 0
        %s465 = scalar_select %p464, %s463, 0
        %p466 = scmp.lt.s32.totalorder %s465, 23
        %s467 = scalar_select %p466, %s465, 23
        %s468 = scalar_lea.vmem %s267, %s467 [#allocation10]
        %v469 = vld [vmem:[%s468] sm:$0x1]
        %p470 = scmp.ge.s32.totalorder %s456, 16
        %s471 = scalar_select %p470, 1, 0
        %v472 = vstv %s471
        %vm473 = vcmp.eq.s32.totalorder %v472, 1
        %v474 = vsel %vm473, %v469, %v462
        %475 = vst [vmem:[#allocation2 + $0x7] sm:$0x1] %v474
        %s476 = sadd.s32 %s308, 8
        %s477 = sld [smem:[#allocation4 + %s476]]
        %p478 = scmp.gt.s32.totalorder %s477, 0
        %s479 = scalar_select %p478, %s477, 0
        %p480 = scmp.lt.s32.totalorder %s479, 15
        %s481 = scalar_select %p480, %s479, 15
        %s482 = scalar_lea.vmem [#allocation5], %s481
        %v483 = vld [vmem:[%s482] sm:$0x1]
        %s484 = ssub.s32 %s477, 16
        %p485 = scmp.gt.s32.totalorder %s484, 0
        %s486 = scalar_select %p485, %s484, 0
        %p487 = scmp.lt.s32.totalorder %s486, 23
        %s488 = scalar_select %p487, %s486, 23
        %s489 = sadd.s32 %s488, 24
        %s490 = scalar_lea.vmem %s267, %s489 [#allocation10]
        %v491 = vld [vmem:[%s490] sm:$0x1]
        %p492 = scmp.ge.s32.totalorder %s477, 16
        %s493 = scalar_select %p492, 1, 0
        %v494 = vstv %s493
        %vm495 = vcmp.eq.s32.totalorder %v494, 1
        %v496 = vsel %vm495, %v491, %v483
        %497 = vst [vmem:[#allocation2 + $0x8] sm:$0x1] %v496
        %s498 = sadd.s32 %s308, 9
        %s499 = sld [smem:[#allocation4 + %s498]]
        %p500 = scmp.gt.s32.totalorder %s499, 0
        %s501 = scalar_select %p500, %s499, 0
        %p502 = scmp.lt.s32.totalorder %s501, 15
        %s503 = scalar_select %p502, %s501, 15
        %s504 = scalar_lea.vmem [#allocation5], %s503
        %v505 = vld [vmem:[%s504] sm:$0x1]
        %s506 = ssub.s32 %s499, 16
        %p507 = scmp.gt.s32.totalorder %s506, 0
        %s508 = scalar_select %p507, %s506, 0
        %p509 = scmp.lt.s32.totalorder %s508, 23
        %s510 = scalar_select %p509, %s508, 23
        %s511 = sadd.s32 %s510, 24
        %s512 = scalar_lea.vmem %s267, %s511 [#allocation10]
        %v513 = vld [vmem:[%s512] sm:$0x1]
        %p514 = scmp.ge.s32.totalorder %s499, 16
        %s515 = scalar_select %p514, 1, 0
        %v516 = vstv %s515
        %vm517 = vcmp.eq.s32.totalorder %v516, 1
        %v518 = vsel %vm517, %v513, %v505
        %519 = vst [vmem:[#allocation2 + $0x9] sm:$0x1] %v518
        %s520 = sadd.s32 %s308, 10
        %s521 = sld [smem:[#allocation4 + %s520]]
        %p522 = scmp.gt.s32.totalorder %s521, 0
        %s523 = scalar_select %p522, %s521, 0
        %p524 = scmp.lt.s32.totalorder %s523, 15
        %s525 = scalar_select %p524, %s523, 15
        %s526 = scalar_lea.vmem [#allocation5], %s525
        %v527 = vld [vmem:[%s526] sm:$0x1]
        %s528 = ssub.s32 %s521, 16
        %p529 = scmp.gt.s32.totalorder %s528, 0
        %s530 = scalar_select %p529, %s528, 0
        %p531 = scmp.lt.s32.totalorder %s530, 23
        %s532 = scalar_select %p531, %s530, 23
        %s533 = sadd.s32 %s532, 24
        %s534 = scalar_lea.vmem %s267, %s533 [#allocation10]
        %v535 = vld [vmem:[%s534] sm:$0x1]
        %p536 = scmp.ge.s32.totalorder %s521, 16
        %s537 = scalar_select %p536, 1, 0
        %v538 = vstv %s537
        %vm539 = vcmp.eq.s32.totalorder %v538, 1
        %v540 = vsel %vm539, %v535, %v527
        %541 = vst [vmem:[#allocation2 + $0xa] sm:$0x1] %v540
        %s542 = sadd.s32 %s308, 11
        %s543 = sld [smem:[#allocation4 + %s542]]
        %p544 = scmp.gt.s32.totalorder %s543, 0
        %s545 = scalar_select %p544, %s543, 0
        %p546 = scmp.lt.s32.totalorder %s545, 15
        %s547 = scalar_select %p546, %s545, 15
        %s548 = scalar_lea.vmem [#allocation5], %s547
        %v549 = vld [vmem:[%s548] sm:$0x1]
        %s550 = ssub.s32 %s543, 16
        %p551 = scmp.gt.s32.totalorder %s550, 0
        %s552 = scalar_select %p551, %s550, 0
        %p553 = scmp.lt.s32.totalorder %s552, 23
        %s554 = scalar_select %p553, %s552, 23
        %s555 = sadd.s32 %s554, 24
        %s556 = scalar_lea.vmem %s267, %s555 [#allocation10]
        %v557 = vld [vmem:[%s556] sm:$0x1]
        %p558 = scmp.ge.s32.totalorder %s543, 16
        %s559 = scalar_select %p558, 1, 0
        %v560 = vstv %s559
        %vm561 = vcmp.eq.s32.totalorder %v560, 1
        %v562 = vsel %vm561, %v557, %v549
        %563 = vst [vmem:[#allocation2 + $0xb] sm:$0x1] %v562
        %s564 = sadd.s32 %s308, 12
        %s565 = sld [smem:[#allocation4 + %s564]]
        %p566 = scmp.gt.s32.totalorder %s565, 0
        %s567 = scalar_select %p566, %s565, 0
        %p568 = scmp.lt.s32.totalorder %s567, 15
        %s569 = scalar_select %p568, %s567, 15
        %s570 = scalar_lea.vmem [#allocation5], %s569
        %v571 = vld [vmem:[%s570] sm:$0x1]
        %s572 = ssub.s32 %s565, 16
        %p573 = scmp.gt.s32.totalorder %s572, 0
        %s574 = scalar_select %p573, %s572, 0
        %p575 = scmp.lt.s32.totalorder %s574, 23
        %s576 = scalar_select %p575, %s574, 23
        %s577 = sadd.s32 %s576, 24
        %s578 = scalar_lea.vmem %s267, %s577 [#allocation10]
        %v579 = vld [vmem:[%s578] sm:$0x1]
        %p580 = scmp.ge.s32.totalorder %s565, 16
        %s581 = scalar_select %p580, 1, 0
        %v582 = vstv %s581
        %vm583 = vcmp.eq.s32.totalorder %v582, 1
        %v584 = vsel %vm583, %v579, %v571
        %585 = vst [vmem:[#allocation2 + $0xc] sm:$0x1] %v584
        %s586 = sadd.s32 %s308, 13
        %s587 = sld [smem:[#allocation4 + %s586]]
        %p588 = scmp.gt.s32.totalorder %s587, 0
        %s589 = scalar_select %p588, %s587, 0
        %p590 = scmp.lt.s32.totalorder %s589, 15
        %s591 = scalar_select %p590, %s589, 15
        %s592 = scalar_lea.vmem [#allocation5], %s591
        %v593 = vld [vmem:[%s592] sm:$0x1]
        %s594 = ssub.s32 %s587, 16
        %p595 = scmp.gt.s32.totalorder %s594, 0
        %s596 = scalar_select %p595, %s594, 0
        %p597 = scmp.lt.s32.totalorder %s596, 23
        %s598 = scalar_select %p597, %s596, 23
        %s599 = sadd.s32 %s598, 24
        %s600 = scalar_lea.vmem %s267, %s599 [#allocation10]
        %v601 = vld [vmem:[%s600] sm:$0x1]
        %p602 = scmp.ge.s32.totalorder %s587, 16
        %s603 = scalar_select %p602, 1, 0
        %v604 = vstv %s603
        %vm605 = vcmp.eq.s32.totalorder %v604, 1
        %v606 = vsel %vm605, %v601, %v593
        %607 = vst [vmem:[#allocation2 + $0xd] sm:$0x1] %v606
        %s608 = sadd.s32 %s308, 14
        %s609 = sld [smem:[#allocation4 + %s608]]
        %p610 = scmp.gt.s32.totalorder %s609, 0
        %s611 = scalar_select %p610, %s609, 0
        %p612 = scmp.lt.s32.totalorder %s611, 15
        %s613 = scalar_select %p612, %s611, 15
        %s614 = scalar_lea.vmem [#allocation5], %s613
        %v615 = vld [vmem:[%s614] sm:$0x1]
        %s616 = ssub.s32 %s609, 16
        %p617 = scmp.gt.s32.totalorder %s616, 0
        %s618 = scalar_select %p617, %s616, 0
        %p619 = scmp.lt.s32.totalorder %s618, 23
        %s620 = scalar_select %p619, %s618, 23
        %s621 = sadd.s32 %s620, 24
        %s622 = scalar_lea.vmem %s267, %s621 [#allocation10]
        %v623 = vld [vmem:[%s622] sm:$0x1]
        %p624 = scmp.ge.s32.totalorder %s609, 16
        %s625 = scalar_select %p624, 1, 0
        %v626 = vstv %s625
        %vm627 = vcmp.eq.s32.totalorder %v626, 1
        %v628 = vsel %vm627, %v623, %v615
        %629 = vst [vmem:[#allocation2 + $0xe] sm:$0x1] %v628
        %s630 = sadd.s32 %s308, 15
        %s631 = sld [smem:[#allocation4 + %s630]]
        %p632 = scmp.gt.s32.totalorder %s631, 0
        %s633 = scalar_select %p632, %s631, 0
        %p634 = scmp.lt.s32.totalorder %s633, 15
        %s635 = scalar_select %p634, %s633, 15
        %s636 = scalar_lea.vmem [#allocation5], %s635
        %v637 = vld [vmem:[%s636] sm:$0x1]
        %s638 = ssub.s32 %s631, 16
        %p639 = scmp.gt.s32.totalorder %s638, 0
        %s640 = scalar_select %p639, %s638, 0
        %p641 = scmp.lt.s32.totalorder %s640, 23
        %s642 = scalar_select %p641, %s640, 23
        %s643 = sadd.s32 %s642, 24
        %s644 = scalar_lea.vmem %s267, %s643 [#allocation10]
        %v645 = vld [vmem:[%s644] sm:$0x1]
        %p646 = scmp.ge.s32.totalorder %s631, 16
        %s647 = scalar_select %p646, 1, 0
        %v648 = vstv %s647
        %vm649 = vcmp.eq.s32.totalorder %v648, 1
        %v650 = vsel %vm649, %v645, %v637
        %651 = vst [vmem:[#allocation2 + $0xf] sm:$0x1] %v650
        %v652 = vld [vmem:[#allocation2] sm:$0xff]
        %v653 = vld [vmem:[#allocation2 + $0x8] sm:$0xff]
        %654 = vadd.xlane.f32.xlu0 %v652
        %v655 = vpop.xlane.xlu0 %654
        %656 = vadd.xlane.f32.xlu0 %v653
        %v657 = vpop.xlane.xlu0 %656
        %v658 = vrcp.pop 128.0
        %v659 = vmul.f32 128.0, %v658
        %v660 = vsub.f32 1.0, %v659
        %v661 = vmul.f32 %v658, %v660
        %v662 = vadd.f32 %v658, %v661
        %vm663 = vweird.f32 %v658
        %v664 = vsel %vm663, %v658, %v662
        %v665 = vmul.f32 %v655, %v664
        %v666 = vmul.f32 %v657, %v664
        %v667 = vsub.f32 %v652, %v665
        %v668 = vsub.f32 %v653, %v666
        %v669 = vmul.f32 %v667, %v667
        %v670 = vmul.f32 %v668, %v668
        %671 = vadd.xlane.f32.xlu0 %v669
        %v672 = vpop.xlane.xlu0 %671
        %673 = vadd.xlane.f32.xlu0 %v670
        %v674 = vpop.xlane.xlu0 %673
        %v675 = vmul.f32 %v672, %v664
        %v676 = vmul.f32 %v674, %v664
        %v677 = vadd.f32 %v675, 1e-12
        %v678 = vadd.f32 %v676, 1e-12
        %v679 = vrsqrt.pop %v677
        %v680 = vmul.f32 %v679, %v677
        %v681 = vmul.f32 %v680, %v679
        %v682 = vmul.f32 0.5, %v681
        %v683 = vsub.f32 1.5, %v682
        %v684 = vmul.f32 %v679, %v683
        %vm685 = vweird.f32 %v677
        %vm686 = vweird.f32 %v679
        %vm687 = vmor %vm685, %vm686
        %v688 = vsel %vm687, %v679, %v684
        %v689 = vrsqrt.pop %v678
        %v690 = vmul.f32 %v689, %v678
        %v691 = vmul.f32 %v690, %v689
        %v692 = vmul.f32 0.5, %v691
        %v693 = vsub.f32 1.5, %v692
        %v694 = vmul.f32 %v689, %v693
        %vm695 = vweird.f32 %v678
        %vm696 = vweird.f32 %v689
        %vm697 = vmor %vm695, %vm696
        %v698 = vsel %vm697, %v689, %v694
        %v699 = vmul.f32 %v667, %v688
        %v700 = vmul.f32 %v668, %v698
        %v701 = vld [vmem:[#allocation8] sm:$0xf]
        %v702 = vperm.slane %v701, 0
        %v703 = vmul.f32 %v699, %v702
        %v704 = vmul.f32 %v700, %v702
        %v705 = vperm.slane %v701, 1
        %v706 = vadd.f32 %v703, %v705
        %v707 = vadd.f32 %v704, %v705
        %v708 = vperm.slane %v701, 2
        %v709 = vmul.f32 %v699, %v708
        %v710 = vmul.f32 %v700, %v708
        %v711 = vperm.slane %v701, 3
        %v712 = vadd.f32 %v709, %v711
        %v713 = vadd.f32 %v710, %v711
        %v714 = vld [vmem:[%s305] sm:$0xff]
        %v715 = vld [vmem:[%s305 + $0x8] sm:$0xff]
        %vm716 = vcmp.gt.f32.partialorder %v714, 0.5
        %vm717 = vcmp.gt.f32.partialorder %v715, 0.5
        %v718 = vsel %vm716, 1, 0
        %v719 = vsel %vm717, 1, 0
        %720 = vset.pattern.permute.xlu0 0
        %721 = vperm.xlu0 %720, %v718
        %v722 = vpop.permute.xlu0 %721
        %723 = vset.pattern.permute.xlu0 0
        %724 = vperm.xlu0 %723, %v719
        %v725 = vpop.permute.xlu0 %724
        %vm726 = vcmp.eq.s32.totalorder %v722, 1
        %vm727 = vcmp.eq.s32.totalorder %v725, 1
        %v728 = vsel %vm726, %v712, %v706
        %v729 = vsel %vm727, %v713, %v707
        %s730 = scalar_lea.vmem %s2, 16
        %v731 = vld [vmem:[%s730] sm:$0xff]
        %v732 = vld [vmem:[%s730 + $0x8] sm:$0xff]
        %v733 = vld [vmem:[%s2] sm:$0xff]
        %v734 = vld [vmem:[%s2 + $0x8] sm:$0xff]
        %v735 = vsel %vm726, %v731, %v733
        %v736 = vsel %vm727, %v732, %v734
        %v737 = vadd.f32 %v728, %v735
        %v738 = vadd.f32 %v729, %v736
        %739 = vst [vmem:[%s299] sm:$0xff] %v737
        %740 = vst [vmem:[%s299 + $0x8] sm:$0xff] %v738
        %s741 = sand.u32 %s153, 1
        %s742 = scalar_lea.sflag [#allocation7], %s741
        %s743 = sand.u32 %s153, 1
        %s744 = smul.addr %s743, 16
        %s745 = scalar_lea.vmem [#allocation11], %s744
        // Predicated region
        $region53: #{tpu_custom_call.1} parent=39 // pred_check
          %p746 = pneg %p163
        $region54: #{tpu_custom_call.1} parent=39 // pred_check_branch
          %748 = sbr.rel (%p746) target = $region56
        $region55: #{tpu_custom_call.1} parent=39 // pred_region
          %s749 = smul.u32 2, %s30
          %751 = vsyncadd %s742, 0
          %s752 = smul.addr %s749, 8
          %s753 = scalar_lea.hbm %s6, %s752
          %s754 = sshll.u32 %s745, 4
          %s755 = int_to_ptr.vmem [resolvable:$true] %s754
          %s756 = sshll.u32 %s753, 4
          %s757 = int_to_ptr.hbm [resolvable:$true] %s756
          %762 = dma.vmem_to_hbm [thread:$0]  %s755, 256, %s757, %s742, 128, 128, 8
        $region56: #{tpu_custom_call.1} parent=39 // pred_fallthru
          _
      $region40: #{tpu_custom_call.1} parent=5 // pred_fallthru
        _
      %p763 = scmp.le.s32.totalorder 2, %s25
      // Predicated region
      $region57: #{tpu_custom_call.1} parent=5 // pred_check
        %p764 = pneg %p763
      $region58: #{tpu_custom_call.1} parent=5 // pred_check_branch
        %766 = sbr.rel (%p764) target = $region60
      $region59: #{tpu_custom_call.1} parent=5 // pred_region
        %s767 = ssub.s32 %s25, 2
        // Predicated region
        $region61: #{tpu_custom_call.1} parent=59 // pred_check
          %p768 = pneg %p169
        $region62: #{tpu_custom_call.1} parent=59 // pred_check_branch
          %770 = sbr.rel (%p768) target = $region64
        $region63: #{tpu_custom_call.1} parent=59 // pred_region
          %s771 = sand.u32 %s154, 1
          %s772 = scalar_lea.sflag [#allocation7], %s771
          %s773 = sand.u32 %s154, 1
          %s774 = smul.addr %s773, 16
          %s775 = scalar_lea.vmem [#allocation11], %s774
          %777 = dma.done %s772, 256
        $region64: #{tpu_custom_call.1} parent=59 // pred_fallthru
          _
      $region60: #{tpu_custom_call.1} parent=5 // pred_fallthru
        _
    $region6: #{tpu_custom_call.1} parent=1 // loop_footer
      %s29 = sadd.s32 1, %s25
    $region7: #{tpu_custom_call.1} parent=1 // loop_footer_branch
      %24 = sbr.rel target = $region3
    $region8: #{tpu_custom_call.1} parent=1 // loop_exit
      _
    %778 = vsyncpa [#allocation6], 1
    %s779 = scalar_lea.sflag [#allocation6], 1
    %780 = vsyncpa %s779, 1
    %781 = vsyncpa [#allocation9], 1
    %782 = vsyncpa [#allocation7], 1
    %s783 = scalar_lea.sflag [#allocation7], 1
    %784 = vsyncpa %s783, 1

</llo_original>
